<compile_context>
chip_gen: v7x
topology: tpu7x:2x2x1
jax: 0.10.0
libtpu: 0.0.40
codegen_flags: <defaults>
</compile_context>

<pallas_src>
import functools

import jax
import jax.numpy as jnp
from jax import lax
from jax.experimental import pallas as pl
from jax.experimental.pallas import tpu as pltpu

# ---- model hyper-parameters (small, consistent with the module's forward) ----
N_EMBD = 32          # n_embd (384 in the original script; scaled down)
NUM_HEADS = 4
HEAD_SIZE = 8        # head_size * num_heads == n_embd
SEQ_LEN = 8          # T  (<= block_size)
BATCH = 2


def _mha_kernel(x_ref, wqkv_ref, wp_ref, bp_ref, o_ref, cat_ref, *, B, T, H, hs):
    """Fused causal MHA + output projection over the whole (flattened) batch.

    x_ref    : (B*T, C)        f32  VMEM
    wqkv_ref : (C, 3*H*hs)     bf16 VMEM   [Wq (scaled) | Wk | Wv], head-major cols
    wp_ref   : (H*hs, C)       bf16 VMEM
    bp_ref   : (1, C)          f32  VMEM
    o_ref    : (B*T, C)        f32  VMEM
    cat_ref  : (B*T, H*hs)     f32  VMEM scratch (replaces jnp.concatenate)
    """
    Hhs = H * hs
    x = x_ref[...].astype(jnp.bfloat16)                       # bf16 MXU operand

    # Single fused QKV projection: (B*T, C) @ (C, 3*H*hs) -> f32.
    qkv = jnp.dot(x, wqkv_ref[...], preferred_element_type=jnp.float32)
    qkv_b = qkv.astype(jnp.bfloat16)                          # bf16 copy for MXU
    q_all = qkv_b[:, 0 * Hhs:1 * Hhs]                         # scale already folded in
    k_all = qkv_b[:, 1 * Hhs:2 * Hhs]
    v_all = qkv_b[:, 2 * Hhs:3 * Hhs]

    # Causal mask within each length-T sequence (built once).
    row = lax.broadcasted_iota(jnp.int32, (T, T), 0)
    col = lax.broadcasted_iota(jnp.int32, (T, T), 1)
    causal = col <= row
    neg_big = jnp.float32(-1e30)   # finite fill: no NaN even for fully-masked rows

    # Attention per (batch, head); head outputs land at static column offsets in
    # the f32 scratch, so the "concat" is free.
    for b in range(B):                       # static unroll (B small)
        r0 = b * T
        for h in range(H):                   # static unroll (H small)
            c0 = h * hs
            q = q_all[r0:r0 + T, c0:c0 + hs]                  # (T, hs) bf16
            k = k_all[r0:r0 + T, c0:c0 + hs]
            v = v_all[r0:r0 + T, c0:c0 + hs]

            # q @ k^T without materializing a transpose: contract last dims.
            s = lax.dot_general(q, k, (((1,), (1,)), ((), ())),
                                preferred_element_type=jnp.float32)   # (T, T) f32
            s = jnp.where(causal, s, neg_big)

            # f32 softmax with EUP reciprocal instead of a VPU divide.
            m = jnp.max(s, axis=-1, keepdims=True)
            p = jnp.exp(s - m)
            denom = jnp.sum(p, axis=-1, keepdims=True)
            att = p * pl.reciprocal(denom, approx=True)
            # (attention dropout is identity in eval mode)

            cat_ref[r0:r0 + T, c0:c0 + hs] = jnp.dot(
                att.astype(jnp.bfloat16), v,
                preferred_element_type=jnp.float32)           # (T, hs) f32

    # Output projection over the already-concatenated scratch: one matmul.
    proj = jnp.dot(cat_ref[...].astype(jnp.bfloat16), wp_ref[...],
                   preferred_element_type=jnp.float32)        # (B*T, C) f32
    # (projection dropout is identity in eval mode)
    o_ref[...] = (proj + bp_ref[0]).astype(o_ref.dtype)


def multi_head_attention(x, wq, wk, wv, wp, bp):
    """x: (B, T, C) f32; wq/wk/wv: (H, C, hs); wp: (H*hs, C); bp: (1, C) -> (B, T, C)."""
    B, T, C = x.shape
    H, _, hs = wq.shape

    # ---- one-time parameter layout prep (would be cached in a real model) ----
    scale = jnp.float32(hs) ** -0.5
    wq_f = jnp.transpose(wq, (1, 0, 2)).reshape(C, H * hs) * scale   # fold softmax scale
    wk_f = jnp.transpose(wk, (1, 0, 2)).reshape(C, H * hs)
    wv_f = jnp.transpose(wv, (1, 0, 2)).reshape(C, H * hs)
    wqkv = jnp.concatenate([wq_f, wk_f, wv_f], axis=1).astype(jnp.bfloat16)  # (C, 3*H*hs)
    wp_b = wp.astype(jnp.bfloat16)

    x2d = x.reshape(B * T, C)    # fold batch into the MXU M dimension

    kernel = functools.partial(_mha_kernel, B=B, T=T, H=H, hs=hs)

    grid_spec = pltpu.PrefetchScalarGridSpec(
        num_scalar_prefetch=0,
        grid=(1,),   # whole problem (B*T rows) in a single step: no per-step overhead
        in_specs=[
            pl.BlockSpec((B * T, C), lambda i: (0, 0)),          # x (flattened)
            pl.BlockSpec((C, 3 * H * hs), lambda i: (0, 0)),     # fused W_qkv (bf16)
            pl.BlockSpec((H * hs, C), lambda i: (0, 0)),         # W_proj (bf16)
            pl.BlockSpec((1, C), lambda i: (0, 0)),              # bias
        ],
        out_specs=pl.BlockSpec((B * T, C), lambda i: (0, 0)),
        scratch_shapes=[pltpu.VMEM((B * T, H * hs), jnp.float32)],
    )

    out2d = pl.pallas_call(
        kernel,
        out_shape=jax.ShapeDtypeStruct((B * T, C), x.dtype),
        grid_spec=grid_spec,
        compiler_params=pltpu.CompilerParams(
            dimension_semantics=("arbitrary",)),
    )(x2d, wqkv, wp_b, bp)
    return out2d.reshape(B, T, C)


def _reference(x, wq, wk, wv, wp, bp):
    """Pure-JAX f32 reference mirroring the PyTorch forward (eval mode)."""
    B, T, C = x.shape
    H, _, hs = wq.shape
    outs = []
    for h in range(H):
        q = x @ wq[h]
        k = x @ wk[h]
        v = x @ wv[h]
        wei = (q @ jnp.swapaxes(k, -1, -2)) * (hs ** -0.5)
        mask = jnp.tril(jnp.ones((T, T), dtype=bool))
        wei = jnp.where(mask, wei, -jnp.inf)
        wei = jax.nn.softmax(wei, axis=-1)
        outs.append(wei @ v)
    cat = jnp.concatenate(outs, axis=-1)
    return cat @ wp + bp[0]


if __name__ == "__main__":
    key = jax.random.PRNGKey(0)
    k_x, k_q, k_k, k_v, k_p, k_b = jax.random.split(key, 6)

    x = jax.random.normal(k_x, (BATCH, SEQ_LEN, N_EMBD), dtype=jnp.float32)

    # Deterministic parameter init (shapes follow the module's __init__).
    wq = jax.random.normal(k_q, (NUM_HEADS, N_EMBD, HEAD_SIZE), jnp.float32) * 0.05
    wk = jax.random.normal(k_k, (NUM_HEADS, N_EMBD, HEAD_SIZE), jnp.float32) * 0.05
    wv = jax.random.normal(k_v, (NUM_HEADS, N_EMBD, HEAD_SIZE), jnp.float32) * 0.05
    wp = jax.random.normal(k_p, (NUM_HEADS * HEAD_SIZE, N_EMBD), jnp.float32) * 0.05
    bp = jax.random.normal(k_b, (1, N_EMBD), jnp.float32) * 0.05

    out = multi_head_attention(x, wq, wk, wv, wp, bp)
    out = jax.block_until_ready(out)

    ref = _reference(x, wq, wk, wv, wp, bp)
    assert out.shape == (BATCH, SEQ_LEN, N_EMBD)
    # bf16 MXU operands (f32 accumulation) => relaxed tolerance vs f32 reference.
    assert jnp.allclose(out, ref, atol=2e-2, rtol=2e-2), "mismatch vs JAX reference"

    print("KERNEL_OK")
</pallas_src>

<mosaic_0001>
module attributes {stable_mosaic.version = 11 : i64} {
  func.func @_mha_kernel(%arg0: i32, %arg1: memref<16x32xf32, #tpu.memory_space<vmem>>, %arg2: memref<32x96xbf16, #tpu.memory_space<vmem>>, %arg3: memref<32x32xbf16, #tpu.memory_space<vmem>>, %arg4: memref<1x32xf32, #tpu.memory_space<vmem>>, %arg5: memref<16x32xf32, #tpu.memory_space<vmem>>, %arg6: memref<16x32xf32, #tpu.memory_space<vmem>>) attributes {dimension_semantics = [#tpu.dimension_semantics<arbitrary>], iteration_bounds = array<i64: 1>, scalar_prefetch = 0 : i64, scratch_operands = 1 : i64, tpu.core_type = #tpu.core_type<tc>, window_params = [{pipeline_mode = #tpu.pipeline_mode<synchronous>, transform_indices = @transform_0, window_bounds = array<i64: 16, 32>}, {pipeline_mode = #tpu.pipeline_mode<synchronous>, transform_indices = @transform_1, window_bounds = array<i64: 32, 96>}, {pipeline_mode = #tpu.pipeline_mode<synchronous>, transform_indices = @transform_2, window_bounds = array<i64: 32, 32>}, {pipeline_mode = #tpu.pipeline_mode<synchronous>, transform_indices = @transform_3, window_bounds = array<i64: 1, 32>}, {pipeline_mode = #tpu.pipeline_mode<synchronous>, transform_indices = @transform_4, window_bounds = array<i64: 16, 32>}]} {
    %c0 = arith.constant 0 : index
    %c0_0 = arith.constant 0 : index
    %0 = vector.load %arg1[%c0, %c0_0] : memref<16x32xf32, #tpu.memory_space<vmem>>, vector<16x32xf32>
    %1 = arith.truncf %0 : vector<16x32xf32> to vector<16x32xbf16>
    %c0_1 = arith.constant 0 : index
    %c0_2 = arith.constant 0 : index
    %2 = vector.load %arg2[%c0_1, %c0_2] : memref<32x96xbf16, #tpu.memory_space<vmem>>, vector<32x96xbf16>
    %cst = arith.constant dense<0.000000e+00> : vector<16x96xf32>
    %3 = tpu.matmul %1, %2, %cst {dimension_numbers = #tpu.dot_dimension_numbers<[1], [0], [0], [1], [0, 0, 1, 1], [], []>} : vector<16x32xbf16>, vector<32x96xbf16>, vector<16x96xf32> -> vector<16x96xf32>
    %4 = arith.truncf %3 : vector<16x96xf32> to vector<16x96xbf16>
    %5 = vector.extract_strided_slice %4 {offsets = [0, 0], sizes = [16, 32], strides = [1, 1]} : vector<16x96xbf16> to vector<16x32xbf16>
    %6 = vector.extract_strided_slice %4 {offsets = [0, 32], sizes = [16, 32], strides = [1, 1]} : vector<16x96xbf16> to vector<16x32xbf16>
    %7 = vector.extract_strided_slice %4 {offsets = [0, 64], sizes = [16, 32], strides = [1, 1]} : vector<16x96xbf16> to vector<16x32xbf16>
    %8 = tpu.iota {dimensions = array<i32: 0>} : vector<8x8xi32>
    %9 = tpu.iota {dimensions = array<i32: 1>} : vector<8x8xi32>
    %10 = arith.cmpi sle, %9, %8 : vector<8x8xi32>
    %11 = vector.extract_strided_slice %5 {offsets = [0, 0], sizes = [8, 8], strides = [1, 1]} : vector<16x32xbf16> to vector<8x8xbf16>
    %12 = vector.extract_strided_slice %6 {offsets = [0, 0], sizes = [8, 8], strides = [1, 1]} : vector<16x32xbf16> to vector<8x8xbf16>
    %13 = vector.extract_strided_slice %7 {offsets = [0, 0], sizes = [8, 8], strides = [1, 1]} : vector<16x32xbf16> to vector<8x8xbf16>
    %cst_3 = arith.constant dense<0.000000e+00> : vector<8x8xf32>
    %14 = tpu.matmul %11, %12, %cst_3 {dimension_numbers = #tpu.dot_dimension_numbers<[1], [1], [0], [0], [0, 0, 1, 0], [], []>} : vector<8x8xbf16>, vector<8x8xbf16>, vector<8x8xf32> -> vector<8x8xf32>
    %cst_4 = arith.constant -1.000000e+30 : f32
    %15 = vector.broadcast %cst_4 : f32 to vector<8x8xf32>
    %16 = arith.select %10, %14, %15 : vector<8x8xi1>, vector<8x8xf32>
    %cst_5 = arith.constant dense<0xFF800000> : vector<8xf32>
    %17 = vector.multi_reduction <maximumf>, %16, %cst_5 [1] : vector<8x8xf32> to vector<8xf32>
    %18 = vector.shape_cast %17 : vector<8xf32> to vector<8x1xf32>
    %19 = vector.broadcast %18 : vector<8x1xf32> to vector<8x8xf32>
    %20 = arith.subf %16, %19 : vector<8x8xf32>
    %21 = math.exp %20 : vector<8x8xf32>
    %cst_6 = arith.constant dense<0.000000e+00> : vector<8xf32>
    %22 = vector.multi_reduction <add>, %21, %cst_6 [1] : vector<8x8xf32> to vector<8xf32>
    %23 = vector.shape_cast %22 : vector<8xf32> to vector<8x1xf32>
    %24 = tpu.reciprocal %23 {approx = true} : vector<8x1xf32> -> vector<8x1xf32>
    %25 = vector.broadcast %24 : vector<8x1xf32> to vector<8x8xf32>
    %26 = arith.mulf %21, %25 : vector<8x8xf32>
    %27 = arith.truncf %26 : vector<8x8xf32> to vector<8x8xbf16>
    %cst_7 = arith.constant dense<0.000000e+00> : vector<8x8xf32>
    %28 = tpu.matmul %27, %13, %cst_7 {dimension_numbers = #tpu.dot_dimension_numbers<[1], [0], [0], [1], [0, 0, 1, 1], [], []>} : vector<8x8xbf16>, vector<8x8xbf16>, vector<8x8xf32> -> vector<8x8xf32>
    %c0_8 = arith.constant 0 : index
    %c0_9 = arith.constant 0 : index
    %29 = vector.load %arg6[%c0_8, %c0_9] : memref<16x32xf32, #tpu.memory_space<vmem>>, vector<8x8xf32>
    tpu.vector_store %arg6[%c0_8, %c0_9], %28 {strides = array<i32>} : memref<16x32xf32, #tpu.memory_space<vmem>>, vector<8x8xf32>,
    %30 = vector.extract_strided_slice %5 {offsets = [0, 8], sizes = [8, 8], strides = [1, 1]} : vector<16x32xbf16> to vector<8x8xbf16>
    %31 = vector.extract_strided_slice %6 {offsets = [0, 8], sizes = [8, 8], strides = [1, 1]} : vector<16x32xbf16> to vector<8x8xbf16>
    %32 = vector.extract_strided_slice %7 {offsets = [0, 8], sizes = [8, 8], strides = [1, 1]} : vector<16x32xbf16> to vector<8x8xbf16>
    %cst_10 = arith.constant dense<0.000000e+00> : vector<8x8xf32>
    %33 = tpu.matmul %30, %31, %cst_10 {dimension_numbers = #tpu.dot_dimension_numbers<[1], [1], [0], [0], [0, 0, 1, 0], [], []>} : vector<8x8xbf16>, vector<8x8xbf16>, vector<8x8xf32> -> vector<8x8xf32>
    %cst_11 = arith.constant -1.000000e+30 : f32
    %34 = vector.broadcast %cst_11 : f32 to vector<8x8xf32>
    %35 = arith.select %10, %33, %34 : vector<8x8xi1>, vector<8x8xf32>
    %cst_12 = arith.constant dense<0xFF800000> : vector<8xf32>
    %36 = vector.multi_reduction <maximumf>, %35, %cst_12 [1] : vector<8x8xf32> to vector<8xf32>
    %37 = vector.shape_cast %36 : vector<8xf32> to vector<8x1xf32>
    %38 = vector.broadcast %37 : vector<8x1xf32> to vector<8x8xf32>
    %39 = arith.subf %35, %38 : vector<8x8xf32>
    %40 = math.exp %39 : vector<8x8xf32>
    %cst_13 = arith.constant dense<0.000000e+00> : vector<8xf32>
    %41 = vector.multi_reduction <add>, %40, %cst_13 [1] : vector<8x8xf32> to vector<8xf32>
    %42 = vector.shape_cast %41 : vector<8xf32> to vector<8x1xf32>
    %43 = tpu.reciprocal %42 {approx = true} : vector<8x1xf32> -> vector<8x1xf32>
    %44 = vector.broadcast %43 : vector<8x1xf32> to vector<8x8xf32>
    %45 = arith.mulf %40, %44 : vector<8x8xf32>
    %46 = arith.truncf %45 : vector<8x8xf32> to vector<8x8xbf16>
    %cst_14 = arith.constant dense<0.000000e+00> : vector<8x8xf32>
    %47 = tpu.matmul %46, %32, %cst_14 {dimension_numbers = #tpu.dot_dimension_numbers<[1], [0], [0], [1], [0, 0, 1, 1], [], []>} : vector<8x8xbf16>, vector<8x8xbf16>, vector<8x8xf32> -> vector<8x8xf32>
    %c0_15 = arith.constant 0 : index
    %c8 = arith.constant 8 : index
    %48 = vector.load %arg6[%c0_15, %c8] : memref<16x32xf32, #tpu.memory_space<vmem>>, vector<8x8xf32>
    tpu.vector_store %arg6[%c0_15, %c8], %47 {strides = array<i32>} : memref<16x32xf32, #tpu.memory_space<vmem>>, vector<8x8xf32>,
    %49 = vector.extract_strided_slice %5 {offsets = [0, 16], sizes = [8, 8], strides = [1, 1]} : vector<16x32xbf16> to vector<8x8xbf16>
    %50 = vector.extract_strided_slice %6 {offsets = [0, 16], sizes = [8, 8], strides = [1, 1]} : vector<16x32xbf16> to vector<8x8xbf16>
    %51 = vector.extract_strided_slice %7 {offsets = [0, 16], sizes = [8, 8], strides = [1, 1]} : vector<16x32xbf16> to vector<8x8xbf16>
    %cst_16 = arith.constant dense<0.000000e+00> : vector<8x8xf32>
    %52 = tpu.matmul %49, %50, %cst_16 {dimension_numbers = #tpu.dot_dimension_numbers<[1], [1], [0], [0], [0, 0, 1, 0], [], []>} : vector<8x8xbf16>, vector<8x8xbf16>, vector<8x8xf32> -> vector<8x8xf32>
    %cst_17 = arith.constant -1.000000e+30 : f32
    %53 = vector.broadcast %cst_17 : f32 to vector<8x8xf32>
    %54 = arith.select %10, %52, %53 : vector<8x8xi1>, vector<8x8xf32>
    %cst_18 = arith.constant dense<0xFF800000> : vector<8xf32>
    %55 = vector.multi_reduction <maximumf>, %54, %cst_18 [1] : vector<8x8xf32> to vector<8xf32>
    %56 = vector.shape_cast %55 : vector<8xf32> to vector<8x1xf32>
    %57 = vector.broadcast %56 : vector<8x1xf32> to vector<8x8xf32>
    %58 = arith.subf %54, %57 : vector<8x8xf32>
    %59 = math.exp %58 : vector<8x8xf32>
    %cst_19 = arith.constant dense<0.000000e+00> : vector<8xf32>
    %60 = vector.multi_reduction <add>, %59, %cst_19 [1] : vector<8x8xf32> to vector<8xf32>
    %61 = vector.shape_cast %60 : vector<8xf32> to vector<8x1xf32>
    %62 = tpu.reciprocal %61 {approx = true} : vector<8x1xf32> -> vector<8x1xf32>
    %63 = vector.broadcast %62 : vector<8x1xf32> to vector<8x8xf32>
    %64 = arith.mulf %59, %63 : vector<8x8xf32>
    %65 = arith.truncf %64 : vector<8x8xf32> to vector<8x8xbf16>
    %cst_20 = arith.constant dense<0.000000e+00> : vector<8x8xf32>
    %66 = tpu.matmul %65, %51, %cst_20 {dimension_numbers = #tpu.dot_dimension_numbers<[1], [0], [0], [1], [0, 0, 1, 1], [], []>} : vector<8x8xbf16>, vector<8x8xbf16>, vector<8x8xf32> -> vector<8x8xf32>
    %c0_21 = arith.constant 0 : index
    %c16 = arith.constant 16 : index
    %67 = vector.load %arg6[%c0_21, %c16] : memref<16x32xf32, #tpu.memory_space<vmem>>, vector<8x8xf32>
    tpu.vector_store %arg6[%c0_21, %c16], %66 {strides = array<i32>} : memref<16x32xf32, #tpu.memory_space<vmem>>, vector<8x8xf32>,
    %68 = vector.extract_strided_slice %5 {offsets = [0, 24], sizes = [8, 8], strides = [1, 1]} : vector<16x32xbf16> to vector<8x8xbf16>
    %69 = vector.extract_strided_slice %6 {offsets = [0, 24], sizes = [8, 8], strides = [1, 1]} : vector<16x32xbf16> to vector<8x8xbf16>
    %70 = vector.extract_strided_slice %7 {offsets = [0, 24], sizes = [8, 8], strides = [1, 1]} : vector<16x32xbf16> to vector<8x8xbf16>
    %cst_22 = arith.constant dense<0.000000e+00> : vector<8x8xf32>
    %71 = tpu.matmul %68, %69, %cst_22 {dimension_numbers = #tpu.dot_dimension_numbers<[1], [1], [0], [0], [0, 0, 1, 0], [], []>} : vector<8x8xbf16>, vector<8x8xbf16>, vector<8x8xf32> -> vector<8x8xf32>
    %cst_23 = arith.constant -1.000000e+30 : f32
    %72 = vector.broadcast %cst_23 : f32 to vector<8x8xf32>
    %73 = arith.select %10, %71, %72 : vector<8x8xi1>, vector<8x8xf32>
    %cst_24 = arith.constant dense<0xFF800000> : vector<8xf32>
    %74 = vector.multi_reduction <maximumf>, %73, %cst_24 [1] : vector<8x8xf32> to vector<8xf32>
    %75 = vector.shape_cast %74 : vector<8xf32> to vector<8x1xf32>
    %76 = vector.broadcast %75 : vector<8x1xf32> to vector<8x8xf32>
    %77 = arith.subf %73, %76 : vector<8x8xf32>
    %78 = math.exp %77 : vector<8x8xf32>
    %cst_25 = arith.constant dense<0.000000e+00> : vector<8xf32>
    %79 = vector.multi_reduction <add>, %78, %cst_25 [1] : vector<8x8xf32> to vector<8xf32>
    %80 = vector.shape_cast %79 : vector<8xf32> to vector<8x1xf32>
    %81 = tpu.reciprocal %80 {approx = true} : vector<8x1xf32> -> vector<8x1xf32>
    %82 = vector.broadcast %81 : vector<8x1xf32> to vector<8x8xf32>
    %83 = arith.mulf %78, %82 : vector<8x8xf32>
    %84 = arith.truncf %83 : vector<8x8xf32> to vector<8x8xbf16>
    %cst_26 = arith.constant dense<0.000000e+00> : vector<8x8xf32>
    %85 = tpu.matmul %84, %70, %cst_26 {dimension_numbers = #tpu.dot_dimension_numbers<[1], [0], [0], [1], [0, 0, 1, 1], [], []>} : vector<8x8xbf16>, vector<8x8xbf16>, vector<8x8xf32> -> vector<8x8xf32>
    %c0_27 = arith.constant 0 : index
    %c24 = arith.constant 24 : index
    %86 = vector.load %arg6[%c0_27, %c24] : memref<16x32xf32, #tpu.memory_space<vmem>>, vector<8x8xf32>
    tpu.vector_store %arg6[%c0_27, %c24], %85 {strides = array<i32>} : memref<16x32xf32, #tpu.memory_space<vmem>>, vector<8x8xf32>,
    %87 = vector.extract_strided_slice %5 {offsets = [8, 0], sizes = [8, 8], strides = [1, 1]} : vector<16x32xbf16> to vector<8x8xbf16>
    %88 = vector.extract_strided_slice %6 {offsets = [8, 0], sizes = [8, 8], strides = [1, 1]} : vector<16x32xbf16> to vector<8x8xbf16>
    %89 = vector.extract_strided_slice %7 {offsets = [8, 0], sizes = [8, 8], strides = [1, 1]} : vector<16x32xbf16> to vector<8x8xbf16>
    %cst_28 = arith.constant dense<0.000000e+00> : vector<8x8xf32>
    %90 = tpu.matmul %87, %88, %cst_28 {dimension_numbers = #tpu.dot_dimension_numbers<[1], [1], [0], [0], [0, 0, 1, 0], [], []>} : vector<8x8xbf16>, vector<8x8xbf16>, vector<8x8xf32> -> vector<8x8xf32>
    %cst_29 = arith.constant -1.000000e+30 : f32
    %91 = vector.broadcast %cst_29 : f32 to vector<8x8xf32>
    %92 = arith.select %10, %90, %91 : vector<8x8xi1>, vector<8x8xf32>
    %cst_30 = arith.constant dense<0xFF800000> : vector<8xf32>
    %93 = vector.multi_reduction <maximumf>, %92, %cst_30 [1] : vector<8x8xf32> to vector<8xf32>
    %94 = vector.shape_cast %93 : vector<8xf32> to vector<8x1xf32>
    %95 = vector.broadcast %94 : vector<8x1xf32> to vector<8x8xf32>
    %96 = arith.subf %92, %95 : vector<8x8xf32>
    %97 = math.exp %96 : vector<8x8xf32>
    %cst_31 = arith.constant dense<0.000000e+00> : vector<8xf32>
    %98 = vector.multi_reduction <add>, %97, %cst_31 [1] : vector<8x8xf32> to vector<8xf32>
    %99 = vector.shape_cast %98 : vector<8xf32> to vector<8x1xf32>
    %100 = tpu.reciprocal %99 {approx = true} : vector<8x1xf32> -> vector<8x1xf32>
    %101 = vector.broadcast %100 : vector<8x1xf32> to vector<8x8xf32>
    %102 = arith.mulf %97, %101 : vector<8x8xf32>
    %103 = arith.truncf %102 : vector<8x8xf32> to vector<8x8xbf16>
    %cst_32 = arith.constant dense<0.000000e+00> : vector<8x8xf32>
    %104 = tpu.matmul %103, %89, %cst_32 {dimension_numbers = #tpu.dot_dimension_numbers<[1], [0], [0], [1], [0, 0, 1, 1], [], []>} : vector<8x8xbf16>, vector<8x8xbf16>, vector<8x8xf32> -> vector<8x8xf32>
    %c8_33 = arith.constant 8 : index
    %c0_34 = arith.constant 0 : index
    %105 = vector.load %arg6[%c8_33, %c0_34] : memref<16x32xf32, #tpu.memory_space<vmem>>, vector<8x8xf32>
    tpu.vector_store %arg6[%c8_33, %c0_34], %104 {strides = array<i32>} : memref<16x32xf32, #tpu.memory_space<vmem>>, vector<8x8xf32>,
    %106 = vector.extract_strided_slice %5 {offsets = [8, 8], sizes = [8, 8], strides = [1, 1]} : vector<16x32xbf16> to vector<8x8xbf16>
    %107 = vector.extract_strided_slice %6 {offsets = [8, 8], sizes = [8, 8], strides = [1, 1]} : vector<16x32xbf16> to vector<8x8xbf16>
    %108 = vector.extract_strided_slice %7 {offsets = [8, 8], sizes = [8, 8], strides = [1, 1]} : vector<16x32xbf16> to vector<8x8xbf16>
    %cst_35 = arith.constant dense<0.000000e+00> : vector<8x8xf32>
    %109 = tpu.matmul %106, %107, %cst_35 {dimension_numbers = #tpu.dot_dimension_numbers<[1], [1], [0], [0], [0, 0, 1, 0], [], []>} : vector<8x8xbf16>, vector<8x8xbf16>, vector<8x8xf32> -> vector<8x8xf32>
    %cst_36 = arith.constant -1.000000e+30 : f32
    %110 = vector.broadcast %cst_36 : f32 to vector<8x8xf32>
    %111 = arith.select %10, %109, %110 : vector<8x8xi1>, vector<8x8xf32>
    %cst_37 = arith.constant dense<0xFF800000> : vector<8xf32>
    %112 = vector.multi_reduction <maximumf>, %111, %cst_37 [1] : vector<8x8xf32> to vector<8xf32>
    %113 = vector.shape_cast %112 : vector<8xf32> to vector<8x1xf32>
    %114 = vector.broadcast %113 : vector<8x1xf32> to vector<8x8xf32>
    %115 = arith.subf %111, %114 : vector<8x8xf32>
    %116 = math.exp %115 : vector<8x8xf32>
    %cst_38 = arith.constant dense<0.000000e+00> : vector<8xf32>
    %117 = vector.multi_reduction <add>, %116, %cst_38 [1] : vector<8x8xf32> to vector<8xf32>
    %118 = vector.shape_cast %117 : vector<8xf32> to vector<8x1xf32>
    %119 = tpu.reciprocal %118 {approx = true} : vector<8x1xf32> -> vector<8x1xf32>
    %120 = vector.broadcast %119 : vector<8x1xf32> to vector<8x8xf32>
    %121 = arith.mulf %116, %120 : vector<8x8xf32>
    %122 = arith.truncf %121 : vector<8x8xf32> to vector<8x8xbf16>
    %cst_39 = arith.constant dense<0.000000e+00> : vector<8x8xf32>
    %123 = tpu.matmul %122, %108, %cst_39 {dimension_numbers = #tpu.dot_dimension_numbers<[1], [0], [0], [1], [0, 0, 1, 1], [], []>} : vector<8x8xbf16>, vector<8x8xbf16>, vector<8x8xf32> -> vector<8x8xf32>
    %c8_40 = arith.constant 8 : index
    %c8_41 = arith.constant 8 : index
    %124 = vector.load %arg6[%c8_40, %c8_41] : memref<16x32xf32, #tpu.memory_space<vmem>>, vector<8x8xf32>
    tpu.vector_store %arg6[%c8_40, %c8_41], %123 {strides = array<i32>} : memref<16x32xf32, #tpu.memory_space<vmem>>, vector<8x8xf32>,
    %125 = vector.extract_strided_slice %5 {offsets = [8, 16], sizes = [8, 8], strides = [1, 1]} : vector<16x32xbf16> to vector<8x8xbf16>
    %126 = vector.extract_strided_slice %6 {offsets = [8, 16], sizes = [8, 8], strides = [1, 1]} : vector<16x32xbf16> to vector<8x8xbf16>
    %127 = vector.extract_strided_slice %7 {offsets = [8, 16], sizes = [8, 8], strides = [1, 1]} : vector<16x32xbf16> to vector<8x8xbf16>
    %cst_42 = arith.constant dense<0.000000e+00> : vector<8x8xf32>
    %128 = tpu.matmul %125, %126, %cst_42 {dimension_numbers = #tpu.dot_dimension_numbers<[1], [1], [0], [0], [0, 0, 1, 0], [], []>} : vector<8x8xbf16>, vector<8x8xbf16>, vector<8x8xf32> -> vector<8x8xf32>
    %cst_43 = arith.constant -1.000000e+30 : f32
    %129 = vector.broadcast %cst_43 : f32 to vector<8x8xf32>
    %130 = arith.select %10, %128, %129 : vector<8x8xi1>, vector<8x8xf32>
    %cst_44 = arith.constant dense<0xFF800000> : vector<8xf32>
    %131 = vector.multi_reduction <maximumf>, %130, %cst_44 [1] : vector<8x8xf32> to vector<8xf32>
    %132 = vector.shape_cast %131 : vector<8xf32> to vector<8x1xf32>
    %133 = vector.broadcast %132 : vector<8x1xf32> to vector<8x8xf32>
    %134 = arith.subf %130, %133 : vector<8x8xf32>
    %135 = math.exp %134 : vector<8x8xf32>
    %cst_45 = arith.constant dense<0.000000e+00> : vector<8xf32>
    %136 = vector.multi_reduction <add>, %135, %cst_45 [1] : vector<8x8xf32> to vector<8xf32>
    %137 = vector.shape_cast %136 : vector<8xf32> to vector<8x1xf32>
    %138 = tpu.reciprocal %137 {approx = true} : vector<8x1xf32> -> vector<8x1xf32>
    %139 = vector.broadcast %138 : vector<8x1xf32> to vector<8x8xf32>
    %140 = arith.mulf %135, %139 : vector<8x8xf32>
    %141 = arith.truncf %140 : vector<8x8xf32> to vector<8x8xbf16>
    %cst_46 = arith.constant dense<0.000000e+00> : vector<8x8xf32>
    %142 = tpu.matmul %141, %127, %cst_46 {dimension_numbers = #tpu.dot_dimension_numbers<[1], [0], [0], [1], [0, 0, 1, 1], [], []>} : vector<8x8xbf16>, vector<8x8xbf16>, vector<8x8xf32> -> vector<8x8xf32>
    %c8_47 = arith.constant 8 : index
    %c16_48 = arith.constant 16 : index
    %143 = vector.load %arg6[%c8_47, %c16_48] : memref<16x32xf32, #tpu.memory_space<vmem>>, vector<8x8xf32>
    tpu.vector_store %arg6[%c8_47, %c16_48], %142 {strides = array<i32>} : memref<16x32xf32, #tpu.memory_space<vmem>>, vector<8x8xf32>,
    %144 = vector.extract_strided_slice %5 {offsets = [8, 24], sizes = [8, 8], strides = [1, 1]} : vector<16x32xbf16> to vector<8x8xbf16>
    %145 = vector.extract_strided_slice %6 {offsets = [8, 24], sizes = [8, 8], strides = [1, 1]} : vector<16x32xbf16> to vector<8x8xbf16>
    %146 = vector.extract_strided_slice %7 {offsets = [8, 24], sizes = [8, 8], strides = [1, 1]} : vector<16x32xbf16> to vector<8x8xbf16>
    %cst_49 = arith.constant dense<0.000000e+00> : vector<8x8xf32>
    %147 = tpu.matmul %144, %145, %cst_49 {dimension_numbers = #tpu.dot_dimension_numbers<[1], [1], [0], [0], [0, 0, 1, 0], [], []>} : vector<8x8xbf16>, vector<8x8xbf16>, vector<8x8xf32> -> vector<8x8xf32>
    %cst_50 = arith.constant -1.000000e+30 : f32
    %148 = vector.broadcast %cst_50 : f32 to vector<8x8xf32>
    %149 = arith.select %10, %147, %148 : vector<8x8xi1>, vector<8x8xf32>
    %cst_51 = arith.constant dense<0xFF800000> : vector<8xf32>
    %150 = vector.multi_reduction <maximumf>, %149, %cst_51 [1] : vector<8x8xf32> to vector<8xf32>
    %151 = vector.shape_cast %150 : vector<8xf32> to vector<8x1xf32>
    %152 = vector.broadcast %151 : vector<8x1xf32> to vector<8x8xf32>
    %153 = arith.subf %149, %152 : vector<8x8xf32>
    %154 = math.exp %153 : vector<8x8xf32>
    %cst_52 = arith.constant dense<0.000000e+00> : vector<8xf32>
    %155 = vector.multi_reduction <add>, %154, %cst_52 [1] : vector<8x8xf32> to vector<8xf32>
    %156 = vector.shape_cast %155 : vector<8xf32> to vector<8x1xf32>
    %157 = tpu.reciprocal %156 {approx = true} : vector<8x1xf32> -> vector<8x1xf32>
    %158 = vector.broadcast %157 : vector<8x1xf32> to vector<8x8xf32>
    %159 = arith.mulf %154, %158 : vector<8x8xf32>
    %160 = arith.truncf %159 : vector<8x8xf32> to vector<8x8xbf16>
    %cst_53 = arith.constant dense<0.000000e+00> : vector<8x8xf32>
    %161 = tpu.matmul %160, %146, %cst_53 {dimension_numbers = #tpu.dot_dimension_numbers<[1], [0], [0], [1], [0, 0, 1, 1], [], []>} : vector<8x8xbf16>, vector<8x8xbf16>, vector<8x8xf32> -> vector<8x8xf32>
    %c8_54 = arith.constant 8 : index
    %c24_55 = arith.constant 24 : index
    %162 = vector.load %arg6[%c8_54, %c24_55] : memref<16x32xf32, #tpu.memory_space<vmem>>, vector<8x8xf32>
    tpu.vector_store %arg6[%c8_54, %c24_55], %161 {strides = array<i32>} : memref<16x32xf32, #tpu.memory_space<vmem>>, vector<8x8xf32>,
    %c0_56 = arith.constant 0 : index
    %c0_57 = arith.constant 0 : index
    %163 = vector.load %arg6[%c0_56, %c0_57] : memref<16x32xf32, #tpu.memory_space<vmem>>, vector<16x32xf32>
    %164 = arith.truncf %163 : vector<16x32xf32> to vector<16x32xbf16>
    %c0_58 = arith.constant 0 : index
    %c0_59 = arith.constant 0 : index
    %165 = vector.load %arg3[%c0_58, %c0_59] : memref<32x32xbf16, #tpu.memory_space<vmem>>, vector<32x32xbf16>
    %cst_60 = arith.constant dense<0.000000e+00> : vector<16x32xf32>
    %166 = tpu.matmul %164, %165, %cst_60 {dimension_numbers = #tpu.dot_dimension_numbers<[1], [0], [0], [1], [0, 0, 1, 1], [], []>} : vector<16x32xbf16>, vector<32x32xbf16>, vector<16x32xf32> -> vector<16x32xf32>
    %c0_61 = arith.constant 0 : index
    %c0_62 = arith.constant 0 : index
    %167 = vector.load %arg4[%c0_61, %c0_62] : memref<1x32xf32, #tpu.memory_space<vmem>>, vector<1x32xf32>
    %168 = vector.shape_cast %167 : vector<1x32xf32> to vector<32xf32>
    %169 = vector.shape_cast %168 : vector<32xf32> to vector<1x32xf32>
    %170 = vector.broadcast %169 : vector<1x32xf32> to vector<16x32xf32>
    %171 = arith.addf %166, %170 : vector<16x32xf32>
    %c0_63 = arith.constant 0 : index
    %c0_64 = arith.constant 0 : index
    %172 = vector.load %arg5[%c0_63, %c0_64] : memref<16x32xf32, #tpu.memory_space<vmem>>, vector<16x32xf32>
    tpu.vector_store %arg5[%c0_63, %c0_64], %171 {strides = array<i32>} : memref<16x32xf32, #tpu.memory_space<vmem>>, vector<16x32xf32>,
    return
  }
  func.func @transform_0(%arg0: i32) -> (i32, i32) {
    %c0_i32 = arith.constant 0 : i32
    %c0_i32_0 = arith.constant 0 : i32
    %c0_i32_1 = arith.constant 0 : i32
    return %c0_i32, %c0_i32_0 : i32, i32
  }
  func.func @transform_1(%arg0: i32) -> (i32, i32) {
    %c0_i32 = arith.constant 0 : i32
    %c0_i32_0 = arith.constant 0 : i32
    %c0_i32_1 = arith.constant 0 : i32
    return %c0_i32, %c0_i32_0 : i32, i32
  }
  func.func @transform_2(%arg0: i32) -> (i32, i32) {
    %c0_i32 = arith.constant 0 : i32
    %c0_i32_0 = arith.constant 0 : i32
    %c0_i32_1 = arith.constant 0 : i32
    return %c0_i32, %c0_i32_0 : i32, i32
  }
  func.func @transform_3(%arg0: i32) -> (i32, i32) {
    %c0_i32 = arith.constant 0 : i32
    %c0_i32_0 = arith.constant 0 : i32
    %c0_i32_1 = arith.constant 0 : i32
    return %c0_i32, %c0_i32_0 : i32, i32
  }
  func.func @transform_4(%arg0: i32) -> (i32, i32) {
    %c0_i32 = arith.constant 0 : i32
    %c0_i32_0 = arith.constant 0 : i32
    %c0_i32_1 = arith.constant 0 : i32
    return %c0_i32, %c0_i32_0 : i32, i32
  }
}

</mosaic_0001>

<llo_original>
// kernel: tpu_custom_call.1
$region0: #{tpu_custom_call.1}
  #allocation0 [shape = 'u32[]', space=smem, size = 0x4, offset = 0x4, fixed_abs, tag = 'smem constant byte address 0x4 - core index']
  #allocation1 [shape = 'u32[144,128]{1,0:T(1,128)}', space=vmem, size = 0x12000, scoped, tag = 'internal scratch']
  #allocation2 [shape = 'f32[16,32]{1,0:T(8,128)}', space=vmem, size = 0x2000, scoped, tag = 'scratch operand']
  %s0 = inlined_call_operand.hbm [shape: f32[16,32], index: 0, kind: input, shape index: {}]
  %s1 = inlined_call_operand.hbm [shape: bf16[32,96], index: 1, kind: input, shape index: {}]
  %s2 = inlined_call_operand.hbm [shape: bf16[32,32], index: 2, kind: input, shape index: {}]
  %s3 = inlined_call_operand.vmem [shape: f32[1,32], index: 3, kind: input, shape index: {}]
  %s4 = inlined_call_operand.hbm [shape: f32[16,32], index: 4, kind: output, shape index: {}]
  %s5 = sld [smem:[#allocation0]]
  $region38: #{tpu_custom_call.1} parent=0
    _
  %s7 = ssub.s32 1, %s5
  %s8 = scalar_select 0, %s7, %s5
  $region1: #{tpu_custom_call.1} parent=0
    #allocation3 [shape = 'u8[8192]{0}', space=vmem, size = 0x2000, scoped, tag = 'input window, operand 0, single buffered']
    #allocation4 [shape = 's32[1]{0}', space=sflag, size = 0x4, scoped, tag = 'scoped memory for tpu_custom_call.1']
    #allocation5 [shape = 's32[1]{0}', space=sflag, size = 0x4, scoped, tag = 'scoped memory for tpu_custom_call.1']
    #allocation6 [shape = 'u8[8192]{0}', space=vmem, size = 0x2000, scoped, tag = 'input window, operand 1, single buffered']
    #allocation7 [shape = 's32[1]{0}', space=sflag, size = 0x4, scoped, tag = 'scoped memory for tpu_custom_call.1']
    #allocation8 [shape = 'u8[8192]{0}', space=vmem, size = 0x2000, scoped, tag = 'input window, operand 2, single buffered']
    #allocation9 [shape = 'u8[8192]{0}', space=vmem, size = 0x2000, scoped, tag = 'output window, operand 0, single buffered']
    %9 = vsyncpa [#allocation4], 0
    %10 = vsyncpa [#allocation7], 0
    %11 = vsyncpa [#allocation5], 0
    // Predicated region
    $region2: #{tpu_custom_call.1} parent=1 // pred_check
      _
    $region3: #{tpu_custom_call.1} parent=1 // pred_check_branch
      %13 = sbr.rel (0) target = $region5
    $region4: #{tpu_custom_call.1} parent=1 // pred_region
      %s15 = ssub.s32 256, 256
      %16 = vsyncadd [#allocation4], %s15
      %s17 = sshll.u32 [#allocation3], 4
      %s18 = int_to_ptr.vmem [resolvable:$true] %s17
      %23 = dma.hbm_to_vmem [thread:$0]  %s0, 256, %s18, [#allocation4], 128, 128, 8
    $region5: #{tpu_custom_call.1} parent=1 // pred_fallthru
      _
    // Predicated region
    $region6: #{tpu_custom_call.1} parent=1 // pred_check
      _
    $region7: #{tpu_custom_call.1} parent=1 // pred_check_branch
      %25 = sbr.rel (0) target = $region9
    $region8: #{tpu_custom_call.1} parent=1 // pred_region
      %s27 = ssub.s32 256, 256
      %28 = vsyncadd [#allocation7], %s27
      %s29 = sshll.u32 [#allocation6], 4
      %s30 = int_to_ptr.vmem [resolvable:$true] %s29
      %35 = dma.hbm_to_vmem [thread:$0]  %s1, 256, %s30, [#allocation7], 64, 64, 4
    $region9: #{tpu_custom_call.1} parent=1 // pred_fallthru
      _
    // Predicated region
    $region10: #{tpu_custom_call.1} parent=1 // pred_check
      _
    $region11: #{tpu_custom_call.1} parent=1 // pred_check_branch
      %37 = sbr.rel (0) target = $region13
    $region12: #{tpu_custom_call.1} parent=1 // pred_region
      %s39 = ssub.s32 256, 256
      %40 = vsyncadd [#allocation7], %s39
      %s41 = sshll.u32 [#allocation8], 4
      %s42 = int_to_ptr.vmem [resolvable:$true] %s41
      %47 = dma.hbm_to_vmem [thread:$0]  %s2, 256, %s42, [#allocation7], 64, 64, 4
    $region13: #{tpu_custom_call.1} parent=1 // pred_fallthru
      _
    // Predicated region
    $region14: #{tpu_custom_call.1} parent=1 // pred_check
      _
    $region15: #{tpu_custom_call.1} parent=1 // pred_check_branch
      %49 = sbr.rel (0) target = $region17
    $region16: #{tpu_custom_call.1} parent=1 // pred_region
      _
    $region17: #{tpu_custom_call.1} parent=1 // pred_fallthru
      _
    // Predicated region
    $region18: #{tpu_custom_call.1} parent=1 // pred_check
      _
    $region19: #{tpu_custom_call.1} parent=1 // pred_check_branch
      %51 = sbr.rel (0) target = $region21
    $region20: #{tpu_custom_call.1} parent=1 // pred_region
      %52 = dma.done [#allocation4], 256
    $region21: #{tpu_custom_call.1} parent=1 // pred_fallthru
      _
    // Predicated region
    $region22: #{tpu_custom_call.1} parent=1 // pred_check
      _
    $region23: #{tpu_custom_call.1} parent=1 // pred_check_branch
      %54 = sbr.rel (0) target = $region25
    $region24: #{tpu_custom_call.1} parent=1 // pred_region
      %55 = dma.done [#allocation7], 256
    $region25: #{tpu_custom_call.1} parent=1 // pred_fallthru
      _
    // Predicated region
    $region26: #{tpu_custom_call.1} parent=1 // pred_check
      _
    $region27: #{tpu_custom_call.1} parent=1 // pred_check_branch
      %57 = sbr.rel (0) target = $region29
    $region28: #{tpu_custom_call.1} parent=1 // pred_region
      %58 = dma.done [#allocation7], 256
    $region29: #{tpu_custom_call.1} parent=1 // pred_fallthru
      _
    %v60 = vld [vmem:[#allocation3] sm:$0xff]
    %v61 = vld [vmem:[#allocation3 + $0x8] sm:$0xff]
    %v62 = vpack.c.bf16 %v61, %v60
    %v63 = vld [vmem:[#allocation6] sm:$0xf]
    %v64 = vld [vmem:[#allocation6 + $0x4] sm:$0xf]
    %v65 = vld [vmem:[#allocation6 + $0x8] sm:$0xf]
    %v66 = vld [vmem:[#allocation6 + $0xc] sm:$0xf]
    %v71 = vunpack.c.l.b16 %v63
    %v72 = vunpack.c.l.b16 %v64
    %v73 = vunpack.c.l.b16 %v65
    %v74 = vunpack.c.l.b16 %v66
    %v75 = vpack.c.b16 %v72, %v71
    %v76 = vpack.c.b16 %v74, %v73
    %vm79 = vcmask 261120
    %v81 = vsel %vm79, %v62, 0
    %83 = vmatprep.subr.bf16.mxu0 0
    %84 = vmatpush1.bf16.msra.mxu0 %v75
    %85 = vmatprep.subr.bf16.mxu0 0
    %86 = vmatpush1.bf16.msra.mxu0 %v76
    %87 = vmatprep.subr.bf16.mxu0 0
    %88 = vmatpush1.bf16.msra.mxu0 0
    %89 = vmatprep.subr.bf16.mxu0 0
    %90 = vmatpush1.bf16.msra.mxu0 0
    %91 = vmatprep.subr.bf16.mxu0 0
    %92 = vmatpush1.bf16.msra.mxu0 0
    %93 = vmatprep.subr.bf16.mxu0 0
    %94 = vmatpush1.bf16.msra.mxu0 0
    %95 = vmatprep.subr.bf16.mxu0 0
    %96 = vmatpush1.bf16.msra.mxu0 0
    %97 = vmatprep.subr.bf16.mxu0 0
    %98 = vmatpush1.bf16.msra.mxu0 0
    %99 = vmatprep.subr.bf16.mxu0 0
    %100 = vmatpush1.bf16.msra.mxu0 0
    %101 = vmatprep.subr.bf16.mxu0 0
    %102 = vmatpush1.bf16.msra.mxu0 0
    %103 = vmatprep.subr.bf16.mxu0 0
    %104 = vmatpush1.bf16.msra.mxu0 0
    %105 = vmatprep.subr.bf16.mxu0 0
    %106 = vmatpush1.bf16.msra.mxu0 0
    %107 = vmatprep.subr.bf16.mxu0 0
    %108 = vmatpush1.bf16.msra.mxu0 0
    %109 = vmatprep.subr.bf16.mxu0 0
    %110 = vmatpush1.bf16.msra.mxu0 0
    %111 = vmatprep.subr.bf16.mxu0 0
    %112 = vmatpush1.bf16.msra.mxu0 0
    %113 = vmatprep.subr.bf16.mxu0 0
    %114 = vmatpush1.bf16.msra.mxu0 0
    %115 = vmatprep.mubr.bf16.mxu0 0
    %116 = vmatmul.mubr.bf16.gmra.mrb[0].mxu0 %v81
    %v117 = vpop.f32.mrb[0].mxu0
    %v118 = vadd.f32 0.0, %v117
    %v119 = vpop.f32.mrb[0].mxu0
    %v120 = vpop.f32.mrb[0].mxu0
    %v121 = vadd.f32 0.0, %v120
    %v122 = vpop.f32.mrb[0].mxu0
    %123 = vdwg.mxu0
    %v124 = vpack.c.bf16 %v121, %v118
    %v125 = vlaneseq
    %v126 = vshrl.u32 %v125, 7
    %v127 = vlaneseq
    %v128 = vand.u32 %v127, 127
    %vm129 = vcmp.le.s32.totalorder %v128, %v126
    %131 = vrot.lane.b32.xlu0 %v124, 96
    %v132 = vpop.permute.xlu0 %131
    %vm133 = vcmask 64512
    %v135 = vsel %vm133, %v124, 0
    %v138 = vsel %vm133, %v132, 0
    %140 = vmatprep.subr.bf16.mxu0 0
    %141 = vmatpush1.bf16.xpose.msra.mxu0 %v138
    %142 = vmatprep.subr.bf16.mxu0 0
    %143 = vmatpush1.bf16.xpose.msra.mxu0 0
    %144 = vmatprep.subr.bf16.mxu0 0
    %145 = vmatpush1.bf16.xpose.msra.mxu0 0
    %146 = vmatprep.subr.bf16.mxu0 0
    %147 = vmatpush1.bf16.xpose.msra.mxu0 0
    %148 = vmatprep.subr.bf16.mxu0 0
    %149 = vmatpush1.bf16.xpose.msra.mxu0 0
    %150 = vmatprep.subr.bf16.mxu0 0
    %151 = vmatpush1.bf16.xpose.msra.mxu0 0
    %152 = vmatprep.subr.bf16.mxu0 0
    %153 = vmatpush1.bf16.xpose.msra.mxu0 0
    %154 = vmatprep.subr.bf16.mxu0 0
    %155 = vmatpush1.bf16.xpose.msra.mxu0 0
    %156 = vmatprep.subr.bf16.mxu0 0
    %157 = vmatpush1.bf16.xpose.msra.mxu0 0
    %158 = vmatprep.subr.bf16.mxu0 0
    %159 = vmatpush1.bf16.xpose.msra.mxu0 0
    %160 = vmatprep.subr.bf16.mxu0 0
    %161 = vmatpush1.bf16.xpose.msra.mxu0 0
    %162 = vmatprep.subr.bf16.mxu0 0
    %163 = vmatpush1.bf16.xpose.msra.mxu0 0
    %164 = vmatprep.subr.bf16.mxu0 0
    %165 = vmatpush1.bf16.xpose.msra.mxu0 0
    %166 = vmatprep.subr.bf16.mxu0 0
    %167 = vmatpush1.bf16.xpose.msra.mxu0 0
    %168 = vmatprep.subr.bf16.mxu0 0
    %169 = vmatpush1.bf16.xpose.msra.mxu0 0
    %170 = vmatprep.subr.bf16.mxu0 0
    %171 = vmatpush1.bf16.xpose.msra.mxu0 0
    %172 = vmatprep.mubr.bf16.mxu0 0
    %173 = vmatmul.mubr.bf16.gmra.mrb[0].mxu0 %v135
    %v174 = vpop.f32.mrb[0].mxu0
    %v175 = vadd.f32 0.0, %v174
    %v176 = vpop.f32.mrb[0].mxu0
    %v177 = vpop.f32.mrb[0].mxu0
    %v178 = vpop.f32.mrb[0].mxu0
    %179 = vdwg.mxu0
    %v180 = vsel %vm129, %v175, -1e+30
    %v181 = vsel %vm133, %v180, -inf
    %182 = vmax.xlane.f32.xlu0 %v181
    %v183 = vpop.xlane.xlu0 %182
    %v184 = vsub.f32 %v180, %v183
    %v185 = vmul.f32 %v184, 1.442695
    %v186 = vpow.pop %v185
    %v187 = vsel %vm133, %v186, 0.0
    %188 = vadd.xlane.f32.xlu0 %v187
    %v189 = vpop.xlane.xlu0 %188
    %v190 = vrcp.pop %v189
    %v191 = vmul.f32 %v186, %v190
    %v192 = vpack.c.bf16 %v191, %v191
    %193 = vrot.lane.b32.xlu0 %v124, 64
    %v194 = vpop.permute.xlu0 %193
    %v196 = vsel %vm133, %v192, 0
    %vm198 = vcmask 1043456
    %v200 = vsel %vm198, %v194, 0
    %202 = vmatprep.subr.bf16.mxu0 0
    %203 = vmatpush1.bf16.msra.mxu0 %v200
    %204 = vmatprep.subr.bf16.mxu0 0
    %205 = vmatpush1.bf16.msra.mxu0 0
    %206 = vmatprep.subr.bf16.mxu0 0
    %207 = vmatpush1.bf16.msra.mxu0 0
    %208 = vmatprep.subr.bf16.mxu0 0
    %209 = vmatpush1.bf16.msra.mxu0 0
    %210 = vmatprep.subr.bf16.mxu0 0
    %211 = vmatpush1.bf16.msra.mxu0 0
    %212 = vmatprep.subr.bf16.mxu0 0
    %213 = vmatpush1.bf16.msra.mxu0 0
    %214 = vmatprep.subr.bf16.mxu0 0
    %215 = vmatpush1.bf16.msra.mxu0 0
    %216 = vmatprep.subr.bf16.mxu0 0
    %217 = vmatpush1.bf16.msra.mxu0 0
    %218 = vmatprep.subr.bf16.mxu0 0
    %219 = vmatpush1.bf16.msra.mxu0 0
    %220 = vmatprep.subr.bf16.mxu0 0
    %221 = vmatpush1.bf16.msra.mxu0 0
    %222 = vmatprep.subr.bf16.mxu0 0
    %223 = vmatpush1.bf16.msra.mxu0 0
    %224 = vmatprep.subr.bf16.mxu0 0
    %225 = vmatpush1.bf16.msra.mxu0 0
    %226 = vmatprep.subr.bf16.mxu0 0
    %227 = vmatpush1.bf16.msra.mxu0 0
    %228 = vmatprep.subr.bf16.mxu0 0
    %229 = vmatpush1.bf16.msra.mxu0 0
    %230 = vmatprep.subr.bf16.mxu0 0
    %231 = vmatpush1.bf16.msra.mxu0 0
    %232 = vmatprep.subr.bf16.mxu0 0
    %233 = vmatpush1.bf16.msra.mxu0 0
    %234 = vmatprep.mubr.bf16.mxu0 0
    %235 = vmatmul.mubr.bf16.gmra.mrb[0].mxu0 %v196
    %v236 = vpop.f32.mrb[0].mxu0
    %v237 = vadd.f32 0.0, %v236
    %v238 = vpop.f32.mrb[0].mxu0
    %v239 = vpop.f32.mrb[0].mxu0
    %v240 = vpop.f32.mrb[0].mxu0
    %241 = vdwg.mxu0
    %242 = vst.msk [vmem:[#allocation2] sm:$0xff] %vm133, %v237
    %243 = vrot.lane.b32.xlu0 %v124, 120
    %v244 = vpop.permute.xlu0 %243
    %245 = vrot.lane.b32.xlu0 %v124, 88
    %v246 = vpop.permute.xlu0 %245
    %v248 = vsel %vm133, %v244, 0
    %v251 = vsel %vm133, %v246, 0
    %253 = vmatprep.subr.bf16.mxu0 0
    %254 = vmatpush1.bf16.xpose.msra.mxu0 %v251
    %255 = vmatprep.subr.bf16.mxu0 0
    %256 = vmatpush1.bf16.xpose.msra.mxu0 0
    %257 = vmatprep.subr.bf16.mxu0 0
    %258 = vmatpush1.bf16.xpose.msra.mxu0 0
    %259 = vmatprep.subr.bf16.mxu0 0
    %260 = vmatpush1.bf16.xpose.msra.mxu0 0
    %261 = vmatprep.subr.bf16.mxu0 0
    %262 = vmatpush1.bf16.xpose.msra.mxu0 0
    %263 = vmatprep.subr.bf16.mxu0 0
    %264 = vmatpush1.bf16.xpose.msra.mxu0 0
    %265 = vmatprep.subr.bf16.mxu0 0
    %266 = vmatpush1.bf16.xpose.msra.mxu0 0
    %267 = vmatprep.subr.bf16.mxu0 0
    %268 = vmatpush1.bf16.xpose.msra.mxu0 0
    %269 = vmatprep.subr.bf16.mxu0 0
    %270 = vmatpush1.bf16.xpose.msra.mxu0 0
    %271 = vmatprep.subr.bf16.mxu0 0
    %272 = vmatpush1.bf16.xpose.msra.mxu0 0
    %273 = vmatprep.subr.bf16.mxu0 0
    %274 = vmatpush1.bf16.xpose.msra.mxu0 0
    %275 = vmatprep.subr.bf16.mxu0 0
    %276 = vmatpush1.bf16.xpose.msra.mxu0 0
    %277 = vmatprep.subr.bf16.mxu0 0
    %278 = vmatpush1.bf16.xpose.msra.mxu0 0
    %279 = vmatprep.subr.bf16.mxu0 0
    %280 = vmatpush1.bf16.xpose.msra.mxu0 0
    %281 = vmatprep.subr.bf16.mxu0 0
    %282 = vmatpush1.bf16.xpose.msra.mxu0 0
    %283 = vmatprep.subr.bf16.mxu0 0
    %284 = vmatpush1.bf16.xpose.msra.mxu0 0
    %285 = vmatprep.mubr.bf16.mxu0 0
    %286 = vmatmul.mubr.bf16.gmra.mrb[0].mxu0 %v248
    %v287 = vpop.f32.mrb[0].mxu0
    %v288 = vadd.f32 0.0, %v287
    %v289 = vpop.f32.mrb[0].mxu0
    %v290 = vpop.f32.mrb[0].mxu0
    %v291 = vpop.f32.mrb[0].mxu0
    %292 = vdwg.mxu0
    %v293 = vsel %vm129, %v288, -1e+30
    %v294 = vsel %vm133, %v293, -inf
    %295 = vmax.xlane.f32.xlu0 %v294
    %v296 = vpop.xlane.xlu0 %295
    %v297 = vsub.f32 %v293, %v296
    %v298 = vmul.f32 %v297, 1.442695
    %v299 = vpow.pop %v298
    %v300 = vsel %vm133, %v299, 0.0
    %301 = vadd.xlane.f32.xlu0 %v300
    %v302 = vpop.xlane.xlu0 %301
    %v303 = vrcp.pop %v302
    %v304 = vmul.f32 %v299, %v303
    %v305 = vpack.c.bf16 %v304, %v304
    %306 = vrot.lane.b32.xlu0 %v124, 56
    %v307 = vpop.permute.xlu0 %306
    %v309 = vsel %vm133, %v305, 0
    %v312 = vsel %vm198, %v307, 0
    %314 = vmatprep.subr.bf16.mxu0 0
    %315 = vmatpush1.bf16.msra.mxu0 %v312
    %316 = vmatprep.subr.bf16.mxu0 0
    %317 = vmatpush1.bf16.msra.mxu0 0
    %318 = vmatprep.subr.bf16.mxu0 0
    %319 = vmatpush1.bf16.msra.mxu0 0
    %320 = vmatprep.subr.bf16.mxu0 0
    %321 = vmatpush1.bf16.msra.mxu0 0
    %322 = vmatprep.subr.bf16.mxu0 0
    %323 = vmatpush1.bf16.msra.mxu0 0
    %324 = vmatprep.subr.bf16.mxu0 0
    %325 = vmatpush1.bf16.msra.mxu0 0
    %326 = vmatprep.subr.bf16.mxu0 0
    %327 = vmatpush1.bf16.msra.mxu0 0
    %328 = vmatprep.subr.bf16.mxu0 0
    %329 = vmatpush1.bf16.msra.mxu0 0
    %330 = vmatprep.subr.bf16.mxu0 0
    %331 = vmatpush1.bf16.msra.mxu0 0
    %332 = vmatprep.subr.bf16.mxu0 0
    %333 = vmatpush1.bf16.msra.mxu0 0
    %334 = vmatprep.subr.bf16.mxu0 0
    %335 = vmatpush1.bf16.msra.mxu0 0
    %336 = vmatprep.subr.bf16.mxu0 0
    %337 = vmatpush1.bf16.msra.mxu0 0
    %338 = vmatprep.subr.bf16.mxu0 0
    %339 = vmatpush1.bf16.msra.mxu0 0
    %340 = vmatprep.subr.bf16.mxu0 0
    %341 = vmatpush1.bf16.msra.mxu0 0
    %342 = vmatprep.subr.bf16.mxu0 0
    %343 = vmatpush1.bf16.msra.mxu0 0
    %344 = vmatprep.subr.bf16.mxu0 0
    %345 = vmatpush1.bf16.msra.mxu0 0
    %346 = vmatprep.mubr.bf16.mxu0 0
    %347 = vmatmul.mubr.bf16.gmra.mrb[0].mxu0 %v309
    %v348 = vpop.f32.mrb[0].mxu0
    %v349 = vadd.f32 0.0, %v348
    %v350 = vpop.f32.mrb[0].mxu0
    %v351 = vpop.f32.mrb[0].mxu0
    %v352 = vpop.f32.mrb[0].mxu0
    %353 = vdwg.mxu0
    %355 = vrot.lane.b32.xlu0 %v349, 8
    %v356 = vpop.permute.xlu0 %355
    %vm358 = vcmask 130112
    %359 = vst.msk [vmem:[#allocation2] sm:$0xff] %vm358, %v356
    %360 = vrot.lane.b32.xlu0 %v124, 112
    %v361 = vpop.permute.xlu0 %360
    %362 = vrot.lane.b32.xlu0 %v124, 80
    %v363 = vpop.permute.xlu0 %362
    %v365 = vsel %vm133, %v361, 0
    %v368 = vsel %vm133, %v363, 0
    %370 = vmatprep.subr.bf16.mxu0 0
    %371 = vmatpush1.bf16.xpose.msra.mxu0 %v368
    %372 = vmatprep.subr.bf16.mxu0 0
    %373 = vmatpush1.bf16.xpose.msra.mxu0 0
    %374 = vmatprep.subr.bf16.mxu0 0
    %375 = vmatpush1.bf16.xpose.msra.mxu0 0
    %376 = vmatprep.subr.bf16.mxu0 0
    %377 = vmatpush1.bf16.xpose.msra.mxu0 0
    %378 = vmatprep.subr.bf16.mxu0 0
    %379 = vmatpush1.bf16.xpose.msra.mxu0 0
    %380 = vmatprep.subr.bf16.mxu0 0
    %381 = vmatpush1.bf16.xpose.msra.mxu0 0
    %382 = vmatprep.subr.bf16.mxu0 0
    %383 = vmatpush1.bf16.xpose.msra.mxu0 0
    %384 = vmatprep.subr.bf16.mxu0 0
    %385 = vmatpush1.bf16.xpose.msra.mxu0 0
    %386 = vmatprep.subr.bf16.mxu0 0
    %387 = vmatpush1.bf16.xpose.msra.mxu0 0
    %388 = vmatprep.subr.bf16.mxu0 0
    %389 = vmatpush1.bf16.xpose.msra.mxu0 0
    %390 = vmatprep.subr.bf16.mxu0 0
    %391 = vmatpush1.bf16.xpose.msra.mxu0 0
    %392 = vmatprep.subr.bf16.mxu0 0
    %393 = vmatpush1.bf16.xpose.msra.mxu0 0
    %394 = vmatprep.subr.bf16.mxu0 0
    %395 = vmatpush1.bf16.xpose.msra.mxu0 0
    %396 = vmatprep.subr.bf16.mxu0 0
    %397 = vmatpush1.bf16.xpose.msra.mxu0 0
    %398 = vmatprep.subr.bf16.mxu0 0
    %399 = vmatpush1.bf16.xpose.msra.mxu0 0
    %400 = vmatprep.subr.bf16.mxu0 0
    %401 = vmatpush1.bf16.xpose.msra.mxu0 0
    %402 = vmatprep.mubr.bf16.mxu0 0
    %403 = vmatmul.mubr.bf16.gmra.mrb[0].mxu0 %v365
    %v404 = vpop.f32.mrb[0].mxu0
    %v405 = vadd.f32 0.0, %v404
    %v406 = vpop.f32.mrb[0].mxu0
    %v407 = vpop.f32.mrb[0].mxu0
    %v408 = vpop.f32.mrb[0].mxu0
    %409 = vdwg.mxu0
    %v410 = vsel %vm129, %v405, -1e+30
    %v411 = vsel %vm133, %v410, -inf
    %412 = vmax.xlane.f32.xlu0 %v411
    %v413 = vpop.xlane.xlu0 %412
    %v414 = vsub.f32 %v410, %v413
    %v415 = vmul.f32 %v414, 1.442695
    %v416 = vpow.pop %v415
    %v417 = vsel %vm133, %v416, 0.0
    %418 = vadd.xlane.f32.xlu0 %v417
    %v419 = vpop.xlane.xlu0 %418
    %v420 = vrcp.pop %v419
    %v421 = vmul.f32 %v416, %v420
    %v422 = vpack.c.bf16 %v421, %v421
    %423 = vrot.lane.b32.xlu0 %v124, 48
    %v424 = vpop.permute.xlu0 %423
    %v426 = vsel %vm133, %v422, 0
    %v429 = vsel %vm198, %v424, 0
    %431 = vmatprep.subr.bf16.mxu0 0
    %432 = vmatpush1.bf16.msra.mxu0 %v429
    %433 = vmatprep.subr.bf16.mxu0 0
    %434 = vmatpush1.bf16.msra.mxu0 0
    %435 = vmatprep.subr.bf16.mxu0 0
    %436 = vmatpush1.bf16.msra.mxu0 0
    %437 = vmatprep.subr.bf16.mxu0 0
    %438 = vmatpush1.bf16.msra.mxu0 0
    %439 = vmatprep.subr.bf16.mxu0 0
    %440 = vmatpush1.bf16.msra.mxu0 0
    %441 = vmatprep.subr.bf16.mxu0 0
    %442 = vmatpush1.bf16.msra.mxu0 0
    %443 = vmatprep.subr.bf16.mxu0 0
    %444 = vmatpush1.bf16.msra.mxu0 0
    %445 = vmatprep.subr.bf16.mxu0 0
    %446 = vmatpush1.bf16.msra.mxu0 0
    %447 = vmatprep.subr.bf16.mxu0 0
    %448 = vmatpush1.bf16.msra.mxu0 0
    %449 = vmatprep.subr.bf16.mxu0 0
    %450 = vmatpush1.bf16.msra.mxu0 0
    %451 = vmatprep.subr.bf16.mxu0 0
    %452 = vmatpush1.bf16.msra.mxu0 0
    %453 = vmatprep.subr.bf16.mxu0 0
    %454 = vmatpush1.bf16.msra.mxu0 0
    %455 = vmatprep.subr.bf16.mxu0 0
    %456 = vmatpush1.bf16.msra.mxu0 0
    %457 = vmatprep.subr.bf16.mxu0 0
    %458 = vmatpush1.bf16.msra.mxu0 0
    %459 = vmatprep.subr.bf16.mxu0 0
    %460 = vmatpush1.bf16.msra.mxu0 0
    %461 = vmatprep.subr.bf16.mxu0 0
    %462 = vmatpush1.bf16.msra.mxu0 0
    %463 = vmatprep.mubr.bf16.mxu0 0
    %464 = vmatmul.mubr.bf16.gmra.mrb[0].mxu0 %v426
    %v465 = vpop.f32.mrb[0].mxu0
    %v466 = vadd.f32 0.0, %v465
    %v467 = vpop.f32.mrb[0].mxu0
    %v468 = vpop.f32.mrb[0].mxu0
    %v469 = vpop.f32.mrb[0].mxu0
    %470 = vdwg.mxu0
    %472 = vrot.lane.b32.xlu0 %v466, 16
    %v473 = vpop.permute.xlu0 %472
    %vm475 = vcmask 195712
    %476 = vst.msk [vmem:[#allocation2] sm:$0xff] %vm475, %v473
    %477 = vrot.lane.b32.xlu0 %v124, 104
    %v478 = vpop.permute.xlu0 %477
    %479 = vrot.lane.b32.xlu0 %v124, 72
    %v480 = vpop.permute.xlu0 %479
    %v482 = vsel %vm133, %v478, 0
    %v485 = vsel %vm133, %v480, 0
    %487 = vmatprep.subr.bf16.mxu0 0
    %488 = vmatpush1.bf16.xpose.msra.mxu0 %v485
    %489 = vmatprep.subr.bf16.mxu0 0
    %490 = vmatpush1.bf16.xpose.msra.mxu0 0
    %491 = vmatprep.subr.bf16.mxu0 0
    %492 = vmatpush1.bf16.xpose.msra.mxu0 0
    %493 = vmatprep.subr.bf16.mxu0 0
    %494 = vmatpush1.bf16.xpose.msra.mxu0 0
    %495 = vmatprep.subr.bf16.mxu0 0
    %496 = vmatpush1.bf16.xpose.msra.mxu0 0
    %497 = vmatprep.subr.bf16.mxu0 0
    %498 = vmatpush1.bf16.xpose.msra.mxu0 0
    %499 = vmatprep.subr.bf16.mxu0 0
    %500 = vmatpush1.bf16.xpose.msra.mxu0 0
    %501 = vmatprep.subr.bf16.mxu0 0
    %502 = vmatpush1.bf16.xpose.msra.mxu0 0
    %503 = vmatprep.subr.bf16.mxu0 0
    %504 = vmatpush1.bf16.xpose.msra.mxu0 0
    %505 = vmatprep.subr.bf16.mxu0 0
    %506 = vmatpush1.bf16.xpose.msra.mxu0 0
    %507 = vmatprep.subr.bf16.mxu0 0
    %508 = vmatpush1.bf16.xpose.msra.mxu0 0
    %509 = vmatprep.subr.bf16.mxu0 0
    %510 = vmatpush1.bf16.xpose.msra.mxu0 0
    %511 = vmatprep.subr.bf16.mxu0 0
    %512 = vmatpush1.bf16.xpose.msra.mxu0 0
    %513 = vmatprep.subr.bf16.mxu0 0
    %514 = vmatpush1.bf16.xpose.msra.mxu0 0
    %515 = vmatprep.subr.bf16.mxu0 0
    %516 = vmatpush1.bf16.xpose.msra.mxu0 0
    %517 = vmatprep.subr.bf16.mxu0 0
    %518 = vmatpush1.bf16.xpose.msra.mxu0 0
    %519 = vmatprep.mubr.bf16.mxu0 0
    %520 = vmatmul.mubr.bf16.gmra.mrb[0].mxu0 %v482
    %v521 = vpop.f32.mrb[0].mxu0
    %v522 = vadd.f32 0.0, %v521
    %v523 = vpop.f32.mrb[0].mxu0
    %v524 = vpop.f32.mrb[0].mxu0
    %v525 = vpop.f32.mrb[0].mxu0
    %526 = vdwg.mxu0
    %v527 = vsel %vm129, %v522, -1e+30
    %v528 = vsel %vm133, %v527, -inf
    %529 = vmax.xlane.f32.xlu0 %v528
    %v530 = vpop.xlane.xlu0 %529
    %v531 = vsub.f32 %v527, %v530
    %v532 = vmul.f32 %v531, 1.442695
    %v533 = vpow.pop %v532
    %v534 = vsel %vm133, %v533, 0.0
    %535 = vadd.xlane.f32.xlu0 %v534
    %v536 = vpop.xlane.xlu0 %535
    %v537 = vrcp.pop %v536
    %v538 = vmul.f32 %v533, %v537
    %v539 = vpack.c.bf16 %v538, %v538
    %540 = vrot.lane.b32.xlu0 %v124, 40
    %v541 = vpop.permute.xlu0 %540
    %v543 = vsel %vm133, %v539, 0
    %v546 = vsel %vm198, %v541, 0
    %548 = vmatprep.subr.bf16.mxu0 0
    %549 = vmatpush1.bf16.msra.mxu0 %v546
    %550 = vmatprep.subr.bf16.mxu0 0
    %551 = vmatpush1.bf16.msra.mxu0 0
    %552 = vmatprep.subr.bf16.mxu0 0
    %553 = vmatpush1.bf16.msra.mxu0 0
    %554 = vmatprep.subr.bf16.mxu0 0
    %555 = vmatpush1.bf16.msra.mxu0 0
    %556 = vmatprep.subr.bf16.mxu0 0
    %557 = vmatpush1.bf16.msra.mxu0 0
    %558 = vmatprep.subr.bf16.mxu0 0
    %559 = vmatpush1.bf16.msra.mxu0 0
    %560 = vmatprep.subr.bf16.mxu0 0
    %561 = vmatpush1.bf16.msra.mxu0 0
    %562 = vmatprep.subr.bf16.mxu0 0
    %563 = vmatpush1.bf16.msra.mxu0 0
    %564 = vmatprep.subr.bf16.mxu0 0
    %565 = vmatpush1.bf16.msra.mxu0 0
    %566 = vmatprep.subr.bf16.mxu0 0
    %567 = vmatpush1.bf16.msra.mxu0 0
    %568 = vmatprep.subr.bf16.mxu0 0
    %569 = vmatpush1.bf16.msra.mxu0 0
    %570 = vmatprep.subr.bf16.mxu0 0
    %571 = vmatpush1.bf16.msra.mxu0 0
    %572 = vmatprep.subr.bf16.mxu0 0
    %573 = vmatpush1.bf16.msra.mxu0 0
    %574 = vmatprep.subr.bf16.mxu0 0
    %575 = vmatpush1.bf16.msra.mxu0 0
    %576 = vmatprep.subr.bf16.mxu0 0
    %577 = vmatpush1.bf16.msra.mxu0 0
    %578 = vmatprep.subr.bf16.mxu0 0
    %579 = vmatpush1.bf16.msra.mxu0 0
    %580 = vmatprep.mubr.bf16.mxu0 0
    %581 = vmatmul.mubr.bf16.gmra.mrb[0].mxu0 %v543
    %v582 = vpop.f32.mrb[0].mxu0
    %v583 = vadd.f32 0.0, %v582
    %v584 = vpop.f32.mrb[0].mxu0
    %v585 = vpop.f32.mrb[0].mxu0
    %v586 = vpop.f32.mrb[0].mxu0
    %587 = vdwg.mxu0
    %589 = vrot.lane.b32.xlu0 %v583, 24
    %v590 = vpop.permute.xlu0 %589
    %vm592 = vcmask 261312
    %593 = vst.msk [vmem:[#allocation2] sm:$0xff] %vm592, %v590
    %v594 = vrot.slane %v124, 4
    %595 = vrot.lane.b32.xlu0 %v594, 96
    %v596 = vpop.permute.xlu0 %595
    %v598 = vsel %vm133, %v594, 0
    %v601 = vsel %vm133, %v596, 0
    %603 = vmatprep.subr.bf16.mxu0 0
    %604 = vmatpush1.bf16.xpose.msra.mxu0 %v601
    %605 = vmatprep.subr.bf16.mxu0 0
    %606 = vmatpush1.bf16.xpose.msra.mxu0 0
    %607 = vmatprep.subr.bf16.mxu0 0
    %608 = vmatpush1.bf16.xpose.msra.mxu0 0
    %609 = vmatprep.subr.bf16.mxu0 0
    %610 = vmatpush1.bf16.xpose.msra.mxu0 0
    %611 = vmatprep.subr.bf16.mxu0 0
    %612 = vmatpush1.bf16.xpose.msra.mxu0 0
    %613 = vmatprep.subr.bf16.mxu0 0
    %614 = vmatpush1.bf16.xpose.msra.mxu0 0
    %615 = vmatprep.subr.bf16.mxu0 0
    %616 = vmatpush1.bf16.xpose.msra.mxu0 0
    %617 = vmatprep.subr.bf16.mxu0 0
    %618 = vmatpush1.bf16.xpose.msra.mxu0 0
    %619 = vmatprep.subr.bf16.mxu0 0
    %620 = vmatpush1.bf16.xpose.msra.mxu0 0
    %621 = vmatprep.subr.bf16.mxu0 0
    %622 = vmatpush1.bf16.xpose.msra.mxu0 0
    %623 = vmatprep.subr.bf16.mxu0 0
    %624 = vmatpush1.bf16.xpose.msra.mxu0 0
    %625 = vmatprep.subr.bf16.mxu0 0
    %626 = vmatpush1.bf16.xpose.msra.mxu0 0
    %627 = vmatprep.subr.bf16.mxu0 0
    %628 = vmatpush1.bf16.xpose.msra.mxu0 0
    %629 = vmatprep.subr.bf16.mxu0 0
    %630 = vmatpush1.bf16.xpose.msra.mxu0 0
    %631 = vmatprep.subr.bf16.mxu0 0
    %632 = vmatpush1.bf16.xpose.msra.mxu0 0
    %633 = vmatprep.subr.bf16.mxu0 0
    %634 = vmatpush1.bf16.xpose.msra.mxu0 0
    %635 = vmatprep.mubr.bf16.mxu0 0
    %636 = vmatmul.mubr.bf16.gmra.mrb[0].mxu0 %v598
    %v637 = vpop.f32.mrb[0].mxu0
    %v638 = vadd.f32 0.0, %v637
    %v639 = vpop.f32.mrb[0].mxu0
    %v640 = vpop.f32.mrb[0].mxu0
    %v641 = vpop.f32.mrb[0].mxu0
    %642 = vdwg.mxu0
    %v643 = vsel %vm129, %v638, -1e+30
    %v644 = vsel %vm133, %v643, -inf
    %645 = vmax.xlane.f32.xlu0 %v644
    %v646 = vpop.xlane.xlu0 %645
    %v647 = vsub.f32 %v643, %v646
    %v648 = vmul.f32 %v647, 1.442695
    %v649 = vpow.pop %v648
    %v650 = vsel %vm133, %v649, 0.0
    %651 = vadd.xlane.f32.xlu0 %v650
    %v652 = vpop.xlane.xlu0 %651
    %v653 = vrcp.pop %v652
    %v654 = vmul.f32 %v649, %v653
    %v655 = vpack.c.bf16 %v654, %v654
    %656 = vrot.lane.b32.xlu0 %v594, 64
    %v657 = vpop.permute.xlu0 %656
    %v659 = vsel %vm133, %v655, 0
    %v662 = vsel %vm198, %v657, 0
    %664 = vmatprep.subr.bf16.mxu0 0
    %665 = vmatpush1.bf16.msra.mxu0 %v662
    %666 = vmatprep.subr.bf16.mxu0 0
    %667 = vmatpush1.bf16.msra.mxu0 0
    %668 = vmatprep.subr.bf16.mxu0 0
    %669 = vmatpush1.bf16.msra.mxu0 0
    %670 = vmatprep.subr.bf16.mxu0 0
    %671 = vmatpush1.bf16.msra.mxu0 0
    %672 = vmatprep.subr.bf16.mxu0 0
    %673 = vmatpush1.bf16.msra.mxu0 0
    %674 = vmatprep.subr.bf16.mxu0 0
    %675 = vmatpush1.bf16.msra.mxu0 0
    %676 = vmatprep.subr.bf16.mxu0 0
    %677 = vmatpush1.bf16.msra.mxu0 0
    %678 = vmatprep.subr.bf16.mxu0 0
    %679 = vmatpush1.bf16.msra.mxu0 0
    %680 = vmatprep.subr.bf16.mxu0 0
    %681 = vmatpush1.bf16.msra.mxu0 0
    %682 = vmatprep.subr.bf16.mxu0 0
    %683 = vmatpush1.bf16.msra.mxu0 0
    %684 = vmatprep.subr.bf16.mxu0 0
    %685 = vmatpush1.bf16.msra.mxu0 0
    %686 = vmatprep.subr.bf16.mxu0 0
    %687 = vmatpush1.bf16.msra.mxu0 0
    %688 = vmatprep.subr.bf16.mxu0 0
    %689 = vmatpush1.bf16.msra.mxu0 0
    %690 = vmatprep.subr.bf16.mxu0 0
    %691 = vmatpush1.bf16.msra.mxu0 0
    %692 = vmatprep.subr.bf16.mxu0 0
    %693 = vmatpush1.bf16.msra.mxu0 0
    %694 = vmatprep.subr.bf16.mxu0 0
    %695 = vmatpush1.bf16.msra.mxu0 0
    %696 = vmatprep.mubr.bf16.mxu0 0
    %697 = vmatmul.mubr.bf16.gmra.mrb[0].mxu0 %v659
    %v698 = vpop.f32.mrb[0].mxu0
    %v699 = vadd.f32 0.0, %v698
    %v700 = vpop.f32.mrb[0].mxu0
    %v701 = vpop.f32.mrb[0].mxu0
    %v702 = vpop.f32.mrb[0].mxu0
    %703 = vdwg.mxu0
    %704 = vst.msk [vmem:[#allocation2 + $0x8] sm:$0xff] %vm133, %v699
    %705 = vrot.lane.b32.xlu0 %v594, 120
    %v706 = vpop.permute.xlu0 %705
    %707 = vrot.lane.b32.xlu0 %v594, 88
    %v708 = vpop.permute.xlu0 %707
    %v710 = vsel %vm133, %v706, 0
    %v713 = vsel %vm133, %v708, 0
    %715 = vmatprep.subr.bf16.mxu0 0
    %716 = vmatpush1.bf16.xpose.msra.mxu0 %v713
    %717 = vmatprep.subr.bf16.mxu0 0
    %718 = vmatpush1.bf16.xpose.msra.mxu0 0
    %719 = vmatprep.subr.bf16.mxu0 0
    %720 = vmatpush1.bf16.xpose.msra.mxu0 0
    %721 = vmatprep.subr.bf16.mxu0 0
    %722 = vmatpush1.bf16.xpose.msra.mxu0 0
    %723 = vmatprep.subr.bf16.mxu0 0
    %724 = vmatpush1.bf16.xpose.msra.mxu0 0
    %725 = vmatprep.subr.bf16.mxu0 0
    %726 = vmatpush1.bf16.xpose.msra.mxu0 0
    %727 = vmatprep.subr.bf16.mxu0 0
    %728 = vmatpush1.bf16.xpose.msra.mxu0 0
    %729 = vmatprep.subr.bf16.mxu0 0
    %730 = vmatpush1.bf16.xpose.msra.mxu0 0
    %731 = vmatprep.subr.bf16.mxu0 0
    %732 = vmatpush1.bf16.xpose.msra.mxu0 0
    %733 = vmatprep.subr.bf16.mxu0 0
    %734 = vmatpush1.bf16.xpose.msra.mxu0 0
    %735 = vmatprep.subr.bf16.mxu0 0
    %736 = vmatpush1.bf16.xpose.msra.mxu0 0
    %737 = vmatprep.subr.bf16.mxu0 0
    %738 = vmatpush1.bf16.xpose.msra.mxu0 0
    %739 = vmatprep.subr.bf16.mxu0 0
    %740 = vmatpush1.bf16.xpose.msra.mxu0 0
    %741 = vmatprep.subr.bf16.mxu0 0
    %742 = vmatpush1.bf16.xpose.msra.mxu0 0
    %743 = vmatprep.subr.bf16.mxu0 0
    %744 = vmatpush1.bf16.xpose.msra.mxu0 0
    %745 = vmatprep.subr.bf16.mxu0 0
    %746 = vmatpush1.bf16.xpose.msra.mxu0 0
    %747 = vmatprep.mubr.bf16.mxu0 0
    %748 = vmatmul.mubr.bf16.gmra.mrb[0].mxu0 %v710
    %v749 = vpop.f32.mrb[0].mxu0
    %v750 = vadd.f32 0.0, %v749
    %v751 = vpop.f32.mrb[0].mxu0
    %v752 = vpop.f32.mrb[0].mxu0
    %v753 = vpop.f32.mrb[0].mxu0
    %754 = vdwg.mxu0
    %v755 = vsel %vm129, %v750, -1e+30
    %v756 = vsel %vm133, %v755, -inf
    %757 = vmax.xlane.f32.xlu0 %v756
    %v758 = vpop.xlane.xlu0 %757
    %v759 = vsub.f32 %v755, %v758
    %v760 = vmul.f32 %v759, 1.442695
    %v761 = vpow.pop %v760
    %v762 = vsel %vm133, %v761, 0.0
    %763 = vadd.xlane.f32.xlu0 %v762
    %v764 = vpop.xlane.xlu0 %763
    %v765 = vrcp.pop %v764
    %v766 = vmul.f32 %v761, %v765
    %v767 = vpack.c.bf16 %v766, %v766
    %768 = vrot.lane.b32.xlu0 %v594, 56
    %v769 = vpop.permute.xlu0 %768
    %v771 = vsel %vm133, %v767, 0
    %v774 = vsel %vm198, %v769, 0
    %776 = vmatprep.subr.bf16.mxu0 0
    %777 = vmatpush1.bf16.msra.mxu0 %v774
    %778 = vmatprep.subr.bf16.mxu0 0
    %779 = vmatpush1.bf16.msra.mxu0 0
    %780 = vmatprep.subr.bf16.mxu0 0
    %781 = vmatpush1.bf16.msra.mxu0 0
    %782 = vmatprep.subr.bf16.mxu0 0
    %783 = vmatpush1.bf16.msra.mxu0 0
    %784 = vmatprep.subr.bf16.mxu0 0
    %785 = vmatpush1.bf16.msra.mxu0 0
    %786 = vmatprep.subr.bf16.mxu0 0
    %787 = vmatpush1.bf16.msra.mxu0 0
    %788 = vmatprep.subr.bf16.mxu0 0
    %789 = vmatpush1.bf16.msra.mxu0 0
    %790 = vmatprep.subr.bf16.mxu0 0
    %791 = vmatpush1.bf16.msra.mxu0 0
    %792 = vmatprep.subr.bf16.mxu0 0
    %793 = vmatpush1.bf16.msra.mxu0 0
    %794 = vmatprep.subr.bf16.mxu0 0
    %795 = vmatpush1.bf16.msra.mxu0 0
    %796 = vmatprep.subr.bf16.mxu0 0
    %797 = vmatpush1.bf16.msra.mxu0 0
    %798 = vmatprep.subr.bf16.mxu0 0
    %799 = vmatpush1.bf16.msra.mxu0 0
    %800 = vmatprep.subr.bf16.mxu0 0
    %801 = vmatpush1.bf16.msra.mxu0 0
    %802 = vmatprep.subr.bf16.mxu0 0
    %803 = vmatpush1.bf16.msra.mxu0 0
    %804 = vmatprep.subr.bf16.mxu0 0
    %805 = vmatpush1.bf16.msra.mxu0 0
    %806 = vmatprep.subr.bf16.mxu0 0
    %807 = vmatpush1.bf16.msra.mxu0 0
    %808 = vmatprep.mubr.bf16.mxu0 0
    %809 = vmatmul.mubr.bf16.gmra.mrb[0].mxu0 %v771
    %v810 = vpop.f32.mrb[0].mxu0
    %v811 = vadd.f32 0.0, %v810
    %v812 = vpop.f32.mrb[0].mxu0
    %v813 = vpop.f32.mrb[0].mxu0
    %v814 = vpop.f32.mrb[0].mxu0
    %815 = vdwg.mxu0
    %817 = vrot.lane.b32.xlu0 %v811, 8
    %v818 = vpop.permute.xlu0 %817
    %820 = vst.msk [vmem:[#allocation2 + $0x8] sm:$0xff] %vm358, %v818
    %821 = vrot.lane.b32.xlu0 %v594, 112
    %v822 = vpop.permute.xlu0 %821
    %823 = vrot.lane.b32.xlu0 %v594, 80
    %v824 = vpop.permute.xlu0 %823
    %v826 = vsel %vm133, %v822, 0
    %v829 = vsel %vm133, %v824, 0
    %831 = vmatprep.subr.bf16.mxu0 0
    %832 = vmatpush1.bf16.xpose.msra.mxu0 %v829
    %833 = vmatprep.subr.bf16.mxu0 0
    %834 = vmatpush1.bf16.xpose.msra.mxu0 0
    %835 = vmatprep.subr.bf16.mxu0 0
    %836 = vmatpush1.bf16.xpose.msra.mxu0 0
    %837 = vmatprep.subr.bf16.mxu0 0
    %838 = vmatpush1.bf16.xpose.msra.mxu0 0
    %839 = vmatprep.subr.bf16.mxu0 0
    %840 = vmatpush1.bf16.xpose.msra.mxu0 0
    %841 = vmatprep.subr.bf16.mxu0 0
    %842 = vmatpush1.bf16.xpose.msra.mxu0 0
    %843 = vmatprep.subr.bf16.mxu0 0
    %844 = vmatpush1.bf16.xpose.msra.mxu0 0
    %845 = vmatprep.subr.bf16.mxu0 0
    %846 = vmatpush1.bf16.xpose.msra.mxu0 0
    %847 = vmatprep.subr.bf16.mxu0 0
    %848 = vmatpush1.bf16.xpose.msra.mxu0 0
    %849 = vmatprep.subr.bf16.mxu0 0
    %850 = vmatpush1.bf16.xpose.msra.mxu0 0
    %851 = vmatprep.subr.bf16.mxu0 0
    %852 = vmatpush1.bf16.xpose.msra.mxu0 0
    %853 = vmatprep.subr.bf16.mxu0 0
    %854 = vmatpush1.bf16.xpose.msra.mxu0 0
    %855 = vmatprep.subr.bf16.mxu0 0
    %856 = vmatpush1.bf16.xpose.msra.mxu0 0
    %857 = vmatprep.subr.bf16.mxu0 0
    %858 = vmatpush1.bf16.xpose.msra.mxu0 0
    %859 = vmatprep.subr.bf16.mxu0 0
    %860 = vmatpush1.bf16.xpose.msra.mxu0 0
    %861 = vmatprep.subr.bf16.mxu0 0
    %862 = vmatpush1.bf16.xpose.msra.mxu0 0
    %863 = vmatprep.mubr.bf16.mxu0 0
    %864 = vmatmul.mubr.bf16.gmra.mrb[0].mxu0 %v826
    %v865 = vpop.f32.mrb[0].mxu0
    %v866 = vadd.f32 0.0, %v865
    %v867 = vpop.f32.mrb[0].mxu0
    %v868 = vpop.f32.mrb[0].mxu0
    %v869 = vpop.f32.mrb[0].mxu0
    %870 = vdwg.mxu0
    %v871 = vsel %vm129, %v866, -1e+30
    %v872 = vsel %vm133, %v871, -inf
    %873 = vmax.xlane.f32.xlu0 %v872
    %v874 = vpop.xlane.xlu0 %873
    %v875 = vsub.f32 %v871, %v874
    %v876 = vmul.f32 %v875, 1.442695
    %v877 = vpow.pop %v876
    %v878 = vsel %vm133, %v877, 0.0
    %879 = vadd.xlane.f32.xlu0 %v878
    %v880 = vpop.xlane.xlu0 %879
    %v881 = vrcp.pop %v880
    %v882 = vmul.f32 %v877, %v881
    %v883 = vpack.c.bf16 %v882, %v882
    %884 = vrot.lane.b32.xlu0 %v594, 48
    %v885 = vpop.permute.xlu0 %884
    %v887 = vsel %vm133, %v883, 0
    %v890 = vsel %vm198, %v885, 0
    %892 = vmatprep.subr.bf16.mxu0 0
    %893 = vmatpush1.bf16.msra.mxu0 %v890
    %894 = vmatprep.subr.bf16.mxu0 0
    %895 = vmatpush1.bf16.msra.mxu0 0
    %896 = vmatprep.subr.bf16.mxu0 0
    %897 = vmatpush1.bf16.msra.mxu0 0
    %898 = vmatprep.subr.bf16.mxu0 0
    %899 = vmatpush1.bf16.msra.mxu0 0
    %900 = vmatprep.subr.bf16.mxu0 0
    %901 = vmatpush1.bf16.msra.mxu0 0
    %902 = vmatprep.subr.bf16.mxu0 0
    %903 = vmatpush1.bf16.msra.mxu0 0
    %904 = vmatprep.subr.bf16.mxu0 0
    %905 = vmatpush1.bf16.msra.mxu0 0
    %906 = vmatprep.subr.bf16.mxu0 0
    %907 = vmatpush1.bf16.msra.mxu0 0
    %908 = vmatprep.subr.bf16.mxu0 0
    %909 = vmatpush1.bf16.msra.mxu0 0
    %910 = vmatprep.subr.bf16.mxu0 0
    %911 = vmatpush1.bf16.msra.mxu0 0
    %912 = vmatprep.subr.bf16.mxu0 0
    %913 = vmatpush1.bf16.msra.mxu0 0
    %914 = vmatprep.subr.bf16.mxu0 0
    %915 = vmatpush1.bf16.msra.mxu0 0
    %916 = vmatprep.subr.bf16.mxu0 0
    %917 = vmatpush1.bf16.msra.mxu0 0
    %918 = vmatprep.subr.bf16.mxu0 0
    %919 = vmatpush1.bf16.msra.mxu0 0
    %920 = vmatprep.subr.bf16.mxu0 0
    %921 = vmatpush1.bf16.msra.mxu0 0
    %922 = vmatprep.subr.bf16.mxu0 0
    %923 = vmatpush1.bf16.msra.mxu0 0
    %924 = vmatprep.mubr.bf16.mxu0 0
    %925 = vmatmul.mubr.bf16.gmra.mrb[0].mxu0 %v887
    %v926 = vpop.f32.mrb[0].mxu0
    %v927 = vadd.f32 0.0, %v926
    %v928 = vpop.f32.mrb[0].mxu0
    %v929 = vpop.f32.mrb[0].mxu0
    %v930 = vpop.f32.mrb[0].mxu0
    %931 = vdwg.mxu0
    %933 = vrot.lane.b32.xlu0 %v927, 16
    %v934 = vpop.permute.xlu0 %933
    %936 = vst.msk [vmem:[#allocation2 + $0x8] sm:$0xff] %vm475, %v934
    %937 = vrot.lane.b32.xlu0 %v594, 104
    %v938 = vpop.permute.xlu0 %937
    %939 = vrot.lane.b32.xlu0 %v594, 72
    %v940 = vpop.permute.xlu0 %939
    %v942 = vsel %vm133, %v938, 0
    %v945 = vsel %vm133, %v940, 0
    %947 = vmatprep.subr.bf16.mxu0 0
    %948 = vmatpush1.bf16.xpose.msra.mxu0 %v945
    %949 = vmatprep.subr.bf16.mxu0 0
    %950 = vmatpush1.bf16.xpose.msra.mxu0 0
    %951 = vmatprep.subr.bf16.mxu0 0
    %952 = vmatpush1.bf16.xpose.msra.mxu0 0
    %953 = vmatprep.subr.bf16.mxu0 0
    %954 = vmatpush1.bf16.xpose.msra.mxu0 0
    %955 = vmatprep.subr.bf16.mxu0 0
    %956 = vmatpush1.bf16.xpose.msra.mxu0 0
    %957 = vmatprep.subr.bf16.mxu0 0
    %958 = vmatpush1.bf16.xpose.msra.mxu0 0
    %959 = vmatprep.subr.bf16.mxu0 0
    %960 = vmatpush1.bf16.xpose.msra.mxu0 0
    %961 = vmatprep.subr.bf16.mxu0 0
    %962 = vmatpush1.bf16.xpose.msra.mxu0 0
    %963 = vmatprep.subr.bf16.mxu0 0
    %964 = vmatpush1.bf16.xpose.msra.mxu0 0
    %965 = vmatprep.subr.bf16.mxu0 0
    %966 = vmatpush1.bf16.xpose.msra.mxu0 0
    %967 = vmatprep.subr.bf16.mxu0 0
    %968 = vmatpush1.bf16.xpose.msra.mxu0 0
    %969 = vmatprep.subr.bf16.mxu0 0
    %970 = vmatpush1.bf16.xpose.msra.mxu0 0
    %971 = vmatprep.subr.bf16.mxu0 0
    %972 = vmatpush1.bf16.xpose.msra.mxu0 0
    %973 = vmatprep.subr.bf16.mxu0 0
    %974 = vmatpush1.bf16.xpose.msra.mxu0 0
    %975 = vmatprep.subr.bf16.mxu0 0
    %976 = vmatpush1.bf16.xpose.msra.mxu0 0
    %977 = vmatprep.subr.bf16.mxu0 0
    %978 = vmatpush1.bf16.xpose.msra.mxu0 0
    %979 = vmatprep.mubr.bf16.mxu0 0
    %980 = vmatmul.mubr.bf16.gmra.mrb[0].mxu0 %v942
    %v981 = vpop.f32.mrb[0].mxu0
    %v982 = vadd.f32 0.0, %v981
    %v983 = vpop.f32.mrb[0].mxu0
    %v984 = vpop.f32.mrb[0].mxu0
    %v985 = vpop.f32.mrb[0].mxu0
    %986 = vdwg.mxu0
    %v987 = vsel %vm129, %v982, -1e+30
    %v988 = vsel %vm133, %v987, -inf
    %989 = vmax.xlane.f32.xlu0 %v988
    %v990 = vpop.xlane.xlu0 %989
    %v991 = vsub.f32 %v987, %v990
    %v992 = vmul.f32 %v991, 1.442695
    %v993 = vpow.pop %v992
    %v994 = vsel %vm133, %v993, 0.0
    %995 = vadd.xlane.f32.xlu0 %v994
    %v996 = vpop.xlane.xlu0 %995
    %v997 = vrcp.pop %v996
    %v998 = vmul.f32 %v993, %v997
    %v999 = vpack.c.bf16 %v998, %v998
    %1000 = vrot.lane.b32.xlu0 %v594, 40
    %v1001 = vpop.permute.xlu0 %1000
    %v1003 = vsel %vm133, %v999, 0
    %v1006 = vsel %vm198, %v1001, 0
    %1008 = vmatprep.subr.bf16.mxu0 0
    %1009 = vmatpush1.bf16.msra.mxu0 %v1006
    %1010 = vmatprep.subr.bf16.mxu0 0
    %1011 = vmatpush1.bf16.msra.mxu0 0
    %1012 = vmatprep.subr.bf16.mxu0 0
    %1013 = vmatpush1.bf16.msra.mxu0 0
    %1014 = vmatprep.subr.bf16.mxu0 0
    %1015 = vmatpush1.bf16.msra.mxu0 0
    %1016 = vmatprep.subr.bf16.mxu0 0
    %1017 = vmatpush1.bf16.msra.mxu0 0
    %1018 = vmatprep.subr.bf16.mxu0 0
    %1019 = vmatpush1.bf16.msra.mxu0 0
    %1020 = vmatprep.subr.bf16.mxu0 0
    %1021 = vmatpush1.bf16.msra.mxu0 0
    %1022 = vmatprep.subr.bf16.mxu0 0
    %1023 = vmatpush1.bf16.msra.mxu0 0
    %1024 = vmatprep.subr.bf16.mxu0 0
    %1025 = vmatpush1.bf16.msra.mxu0 0
    %1026 = vmatprep.subr.bf16.mxu0 0
    %1027 = vmatpush1.bf16.msra.mxu0 0
    %1028 = vmatprep.subr.bf16.mxu0 0
    %1029 = vmatpush1.bf16.msra.mxu0 0
    %1030 = vmatprep.subr.bf16.mxu0 0
    %1031 = vmatpush1.bf16.msra.mxu0 0
    %1032 = vmatprep.subr.bf16.mxu0 0
    %1033 = vmatpush1.bf16.msra.mxu0 0
    %1034 = vmatprep.subr.bf16.mxu0 0
    %1035 = vmatpush1.bf16.msra.mxu0 0
    %1036 = vmatprep.subr.bf16.mxu0 0
    %1037 = vmatpush1.bf16.msra.mxu0 0
    %1038 = vmatprep.subr.bf16.mxu0 0
    %1039 = vmatpush1.bf16.msra.mxu0 0
    %1040 = vmatprep.mubr.bf16.mxu0 0
    %1041 = vmatmul.mubr.bf16.gmra.mrb[0].mxu0 %v1003
    %v1042 = vpop.f32.mrb[0].mxu0
    %v1043 = vadd.f32 0.0, %v1042
    %v1044 = vpop.f32.mrb[0].mxu0
    %v1045 = vpop.f32.mrb[0].mxu0
    %v1046 = vpop.f32.mrb[0].mxu0
    %1047 = vdwg.mxu0
    %1049 = vrot.lane.b32.xlu0 %v1043, 24
    %v1050 = vpop.permute.xlu0 %1049
    %1052 = vst.msk [vmem:[#allocation2 + $0x8] sm:$0xff] %vm592, %v1050
    %v1053 = vld [vmem:[#allocation2] sm:$0xff]
    %v1054 = vld [vmem:[#allocation2 + $0x8] sm:$0xff]
    %v1055 = vpack.c.bf16 %v1054, %v1053
    %v1056 = vld [vmem:[#allocation8] sm:$0xf]
    %v1057 = vld [vmem:[#allocation8 + $0x4] sm:$0xf]
    %v1058 = vld [vmem:[#allocation8 + $0x8] sm:$0xf]
    %v1059 = vld [vmem:[#allocation8 + $0xc] sm:$0xf]
    %v1060 = vld [vmem:[%s3] sm:$0x1]
    %v1062 = vlaneseq
    %v1063 = vshrl.u32 %v1062, 7
    %v1064 = vsub.s32 0, %v1063
    %v1065 = vrot.slane %v1060, %v1064
    %v1071 = vunpack.c.l.b16 %v1056
    %v1072 = vunpack.c.l.b16 %v1057
    %v1073 = vunpack.c.l.b16 %v1058
    %v1074 = vunpack.c.l.b16 %v1059
    %v1075 = vpack.c.b16 %v1072, %v1071
    %v1076 = vpack.c.b16 %v1074, %v1073
    %v1080 = vsel %vm79, %v1055, 0
    %1082 = vmatprep.subr.bf16.mxu0 0
    %1083 = vmatpush1.bf16.msra.mxu0 %v1075
    %1084 = vmatprep.subr.bf16.mxu0 0
    %1085 = vmatpush1.bf16.msra.mxu0 %v1076
    %1086 = vmatprep.subr.bf16.mxu0 0
    %1087 = vmatpush1.bf16.msra.mxu0 0
    %1088 = vmatprep.subr.bf16.mxu0 0
    %1089 = vmatpush1.bf16.msra.mxu0 0
    %1090 = vmatprep.subr.bf16.mxu0 0
    %1091 = vmatpush1.bf16.msra.mxu0 0
    %1092 = vmatprep.subr.bf16.mxu0 0
    %1093 = vmatpush1.bf16.msra.mxu0 0
    %1094 = vmatprep.subr.bf16.mxu0 0
    %1095 = vmatpush1.bf16.msra.mxu0 0
    %1096 = vmatprep.subr.bf16.mxu0 0
    %1097 = vmatpush1.bf16.msra.mxu0 0
    %1098 = vmatprep.subr.bf16.mxu0 0
    %1099 = vmatpush1.bf16.msra.mxu0 0
    %1100 = vmatprep.subr.bf16.mxu0 0
    %1101 = vmatpush1.bf16.msra.mxu0 0
    %1102 = vmatprep.subr.bf16.mxu0 0
    %1103 = vmatpush1.bf16.msra.mxu0 0
    %1104 = vmatprep.subr.bf16.mxu0 0
    %1105 = vmatpush1.bf16.msra.mxu0 0
    %1106 = vmatprep.subr.bf16.mxu0 0
    %1107 = vmatpush1.bf16.msra.mxu0 0
    %1108 = vmatprep.subr.bf16.mxu0 0
    %1109 = vmatpush1.bf16.msra.mxu0 0
    %1110 = vmatprep.subr.bf16.mxu0 0
    %1111 = vmatpush1.bf16.msra.mxu0 0
    %1112 = vmatprep.subr.bf16.mxu0 0
    %1113 = vmatpush1.bf16.msra.mxu0 0
    %1114 = vmatprep.mubr.bf16.mxu0 0
    %1115 = vmatmul.mubr.bf16.gmra.mrb[0].mxu0 %v1080
    %v1116 = vpop.f32.mrb[0].mxu0
    %v1117 = vadd.f32 %v1065, %v1116
    %v1118 = vpop.f32.mrb[0].mxu0
    %v1119 = vpop.f32.mrb[0].mxu0
    %v1120 = vadd.f32 %v1065, %v1119
    %v1121 = vpop.f32.mrb[0].mxu0
    %1122 = vdwg.mxu0
    %1123 = vst.msk [vmem:[#allocation9] sm:$0xff] %vm79, %v1117
    %1124 = vst.msk [vmem:[#allocation9 + $0x8] sm:$0xff] %vm79, %v1120
    // Predicated region
    $region30: #{tpu_custom_call.1} parent=1 // pred_check
      _
    $region31: #{tpu_custom_call.1} parent=1 // pred_check_branch
      %1126 = sbr.rel (0) target = $region33
    $region32: #{tpu_custom_call.1} parent=1 // pred_region
      %s1128 = ssub.s32 256, 256
      %1129 = vsyncadd [#allocation5], %s1128
      %s1130 = sshll.u32 [#allocation9], 4
      %s1131 = int_to_ptr.vmem [resolvable:$true] %s1130
      %1136 = dma.vmem_to_hbm [thread:$0]  %s1131, 256, %s4, [#allocation5], 128, 128, 8
    $region33: #{tpu_custom_call.1} parent=1 // pred_fallthru
      _
    // Predicated region
    $region34: #{tpu_custom_call.1} parent=1 // pred_check
      _
    $region35: #{tpu_custom_call.1} parent=1 // pred_check_branch
      %1138 = sbr.rel (0) target = $region37
    $region36: #{tpu_custom_call.1} parent=1 // pred_region
      %1139 = dma.done [#allocation5], 256
    $region37: #{tpu_custom_call.1} parent=1 // pred_fallthru
      _
    %1140 = vsyncpa [#allocation4], 1
    %1141 = vsyncpa [#allocation7], 1
    %1142 = vsyncpa [#allocation5], 1

</llo_original>
